<compile_context>
chip_gen: v5e
topology: v5e:2x2
jax: 0.10.0
libtpu: 0.0.40
codegen_flags: <defaults>
</compile_context>

<pallas_src>
from functools import partial

import jax
import jax.numpy as jnp
from jax.experimental import pallas as pl
from jax.experimental.pallas import tpu as pltpu


def decoder_rnn_kernel(x_ref, ywb_ref, w_pre_ref, w_step_ref, w2bd_ref, w_rows_ref,
                       out_ref, *, dh, eh, tm1, approx_softmax):
    B = x_ref.shape[0]
    TE = tm1 * eh              # flattened (time, enc-feature) lane width
    DH4 = 4 * dh               # packed LSTM gate width (i|f|g|o)

    x_flat = x_ref[...]                                   # (B, TE)
    ywb = ywb_ref[...]                                    # (B, tm1) = y*wu_y + bu
    w_pre = w_pre_ref[...]                                # (TE, TE + 2*tm1)
    w_step = w_step_ref[...]                              # (2dh, TE + 4dh)
    w2bd = w2bd_ref[...]                                  # (TE, tm1)

    # Packed row constants (loaded once, hoisted out of the unrolled loop).
    b1t = w_rows_ref[0:1, 0:TE]                           # (1, TE)   b1 tiled tm1x
    wih = w_rows_ref[1:2, 0:DH4]                          # (1, 4dh)  LSTM input weights
    woh = w_rows_ref[1:2, DH4:DH4 + dh]                   # (1, dh)   lin_out h weights
    bo = w_rows_ref[1:2, DH4 + dh:DH4 + dh + 1]           # (1, 1)    lin_out bias
    b_all = w_rows_ref[2:3, 0:DH4]                        # (1, 4dh)  b_ih + b_hh

    # ---- prologue: ALL loop-invariant x projections in one MXU matmul ----
    proj = jnp.dot(x_flat, w_pre, preferred_element_type=jnp.float32)
    xpb = proj[:, 0:TE] + b1t                             # tile_t(x_t @ W1_x) + b1
    xu = proj[:, TE:TE + tm1]                             # x_t @ Wu_c   (context fold)
    xo = proj[:, TE + tm1:TE + 2 * tm1]                   # x_t @ Wo_c   (context fold)

    hc = jnp.zeros((B, 2 * dh), jnp.float32)              # packed [h | c] state
    beta = jnp.zeros((B, tm1), jnp.float32)

    for t in range(tm1):  # unrolled: tm1 is a small static constant
        if t == 0:
            # hc == 0 at the first step: skip the matmul entirely (exact).
            att_in = xpb
            gates_hc = jnp.zeros((B, DH4), jnp.float32)
        else:
            # ONE MXU op: [tiled attention projection of (h,c) | h @ W_hh gates]
            sp = jnp.dot(hc, w_step, preferred_element_type=jnp.float32)
            att_in = sp[:, 0:TE] + xpb
            gates_hc = sp[:, TE:TE + DH4]

        # attention over the T-1 encoder positions (lane-dense tanh on (B, TE))
        z = jnp.tanh(att_in)
        e = jnp.dot(z, w2bd, preferred_element_type=jnp.float32)      # (B, tm1)
        e = e - jnp.max(e, axis=1, keepdims=True)
        p = jnp.exp(e)
        denom = jnp.sum(p, axis=1, keepdims=True)
        if approx_softmax:
            beta = p * pl.reciprocal(denom, approx=True)
        else:
            beta = p / denom

        # lin_upd: context@Wu_c + y_t*wu_y + bu  ==  beta.xu + ywb[:, t]
        y_new = jnp.sum(beta * xu, axis=1, keepdims=True) + ywb[:, t:t + 1]

        # LSTM cell, fused gates (PyTorch order i, f, g, o), lane-dense sigmoid
        pre = y_new * wih + gates_hc + b_all                          # (B, 4dh)
        sig = jax.nn.sigmoid(pre)
        i_g = sig[:, 0:dh]
        f_g = sig[:, dh:2 * dh]
        o_g = sig[:, 3 * dh:DH4]
        g_g = jnp.tanh(pre[:, 2 * dh:3 * dh])

        c_new = f_g * hc[:, dh:2 * dh] + i_g * g_g
        h_new = o_g * jnp.tanh(c_new)
        hc = jnp.concatenate([h_new, c_new], axis=1)                  # repack [h | c]

    # lin_out on [h, context]:  h@Wo_h + beta.xo + bo   (context fold, exact)
    pred = (jnp.sum(hc[:, 0:dh] * woh, axis=1, keepdims=True)
            + jnp.sum(beta * xo, axis=1, keepdims=True)
            + bo)                                                     # (B, 1)
    # lane-dense, unmasked store; wrapper slices column 0.
    out_ref[...] = jnp.broadcast_to(pred, out_ref.shape).astype(out_ref.dtype)


@partial(jax.jit, static_argnames=("batch_tile", "approx_softmax"))
def decoder_rnn_pallas(params, x, y, batch_tile=128, approx_softmax=False):
    """Wrapper: packs weights into 4 arrays, pads batch, calls the kernel."""
    B, Tm1, eh = x.shape
    dh = params["w_hh"].shape[1]
    TE = Tm1 * eh
    DH4 = 4 * dh

    # ---- batch tile: big default (fills MXU M, amortizes grid overhead); ensure
    #      >= 2 grid steps when the padded batch allows, so v7x's 2nd TC gets work.
    B8 = -(-B // 8) * 8
    bt = max(8, min((batch_tile // 8) * 8, B8))
    if B8 >= 16 and B8 // bt < 2:
        bt = max(8, ((B8 // 2) // 8) * 8)
    B_pad = -(-B // bt) * bt

    x = x.astype(jnp.float32)
    y = y.astype(jnp.float32)
    if B_pad != B:
        x = jnp.pad(x, ((0, B_pad - B), (0, 0), (0, 0)))
        y = jnp.pad(y, ((0, B_pad - B), (0, 0)))

    x_flat = x.reshape(B_pad, TE)
    # lin_upd's y branch folded here (removes the wu_y / bu scalar refs entirely).
    ywb = y * params["wu"][0, eh] + params["bu"][0]                   # (B_pad, Tm1)

    # ---- split raw weights ----
    w1T = params["w1"].T                                  # (2dh+eh, eh)
    w1_h, w1_c, w1_x = w1T[:dh], w1T[dh:2 * dh], w1T[2 * dh:]
    b1 = params["b1"]                                     # (eh,)
    w2_col = params["w2"].reshape(eh, 1)                  # b2 dropped (softmax-invariant)
    wu_c = params["wu"][:, :eh].reshape(eh, 1)
    wo_h = params["wo"][0, :dh]                           # (dh,)
    wo_c = params["wo"][:, dh:].reshape(eh, 1)
    bo = params["bo"].reshape(1)

    def block_diag(w, reps):
        k, n = w.shape
        eye = jnp.eye(reps, dtype=w.dtype)
        return (eye[:, None, :, None] * w[None, :, None, :]).reshape(reps * k, reps * n)

    # packed weight 1: prologue projections [W1x_bd | Wu_bd | Wo_bd]
    w_pre = jnp.concatenate(
        [block_diag(w1_x, Tm1), block_diag(wu_c, Tm1), block_diag(wo_c, Tm1)], axis=1)

    # packed weight 2: per-step [tiled W1_{h,c} | W_hh^T (c-rows zero)]
    w1_hc = jnp.concatenate([w1_h, w1_c], axis=0)                     # (2dh, eh)
    whh_ext = jnp.concatenate(
        [params["w_hh"].T, jnp.zeros((dh, DH4), jnp.float32)], axis=0)  # (2dh, 4dh)
    w_step = jnp.concatenate([jnp.tile(w1_hc, (1, Tm1)), whh_ext], axis=1)

    # packed weight 3: block-diagonal attention score weights
    w2_bd = block_diag(w2_col, Tm1)                                   # (TE, Tm1)

    # packed weight 4: row constants [b1 tiled; w_ih|wo_h|bo; b_ih+b_hh]
    W = max(TE, DH4 + dh + 1)
    row0 = jnp.concatenate([jnp.tile(b1, Tm1), jnp.zeros((W - TE,), jnp.float32)])
    row1 = jnp.concatenate([params["w_ih"].reshape(DH4), wo_h, bo,
                            jnp.zeros((W - DH4 - dh - 1,), jnp.float32)])
    row2 = jnp.concatenate([(params["b_ih"] + params["b_hh"]).reshape(DH4),
                            jnp.zeros((W - DH4,), jnp.float32)])
    w_rows = jnp.stack([row0, row1, row2], axis=0)                    # (3, W)

    kern = partial(decoder_rnn_kernel, dh=dh, eh=eh, tm1=Tm1,
                   approx_softmax=approx_softmax)

    def wspec(shape):
        return pl.BlockSpec(shape, lambda i: (0, 0))

    out = pl.pallas_call(
        kern,
        out_shape=jax.ShapeDtypeStruct((B_pad, 128), jnp.float32),
        grid_spec=pltpu.PrefetchScalarGridSpec(
            num_scalar_prefetch=0,
            grid=(B_pad // bt,),
            in_specs=[
                pl.BlockSpec((bt, TE), lambda i: (i, 0)),     # x_flat: batch-tiled
                pl.BlockSpec((bt, Tm1), lambda i: (i, 0)),    # ywb:    batch-tiled
                wspec(w_pre.shape),
                wspec(w_step.shape),
                wspec(w2_bd.shape),
                wspec(w_rows.shape),
            ],
            out_specs=pl.BlockSpec((bt, 128), lambda i: (i, 0)),
        ),
        compiler_params=pltpu.CompilerParams(
            dimension_semantics=("parallel",)),
    )(x_flat, ywb, w_pre, w_step, w2_bd, w_rows)

    return out[:B, 0:1]


def decoder_rnn_ref(params, x, y, T, dh, eh):
    """Pure-JAX reference mirroring the PyTorch forward pass."""
    B = x.shape[0]
    h = jnp.zeros((B, dh), jnp.float32)
    c = jnp.zeros((B, dh), jnp.float32)
    context = jnp.zeros((B, eh), jnp.float32)
    for t in range(T - 1):
        h_rep = jnp.broadcast_to(h[:, None, :], (B, T - 1, dh))
        c_rep = jnp.broadcast_to(c[:, None, :], (B, T - 1, dh))
        l = jnp.concatenate([h_rep, c_rep, x], axis=2).reshape(-1, 2 * dh + eh)
        z = jnp.tanh(l @ params["w1"].T + params["b1"])
        e = (z @ params["w2"].T + params["b2"]).reshape(B, T - 1)
        beta = jax.nn.softmax(e, axis=1)
        context = jnp.einsum("bt,bte->be", beta, x)
        y_new = (jnp.concatenate([context, y[:, t:t + 1]], axis=1) @ params["wu"].T
                 + params["bu"])
        gates = (y_new @ params["w_ih"].T + h @ params["w_hh"].T
                 + params["b_ih"] + params["b_hh"])
        i_g = jax.nn.sigmoid(gates[:, 0 * dh:1 * dh])
        f_g = jax.nn.sigmoid(gates[:, 1 * dh:2 * dh])
        g_g = jnp.tanh(gates[:, 2 * dh:3 * dh])
        o_g = jax.nn.sigmoid(gates[:, 3 * dh:4 * dh])
        c = f_g * c + i_g * g_g
        h = o_g * jnp.tanh(c)
    return jnp.concatenate([h, context], axis=1) @ params["wo"].T + params["bo"]


def init_params(key, dh, eh):
    ks = jax.random.split(key, 12)
    s = 0.1
    return {
        "w1":   s * jax.random.normal(ks[0], (eh, 2 * dh + eh), jnp.float32),
        "b1":   s * jax.random.normal(ks[1], (eh,), jnp.float32),
        "w2":   s * jax.random.normal(ks[2], (1, eh), jnp.float32),
        "b2":   s * jax.random.normal(ks[3], (1,), jnp.float32),
        "wu":   jax.random.normal(ks[4], (1, eh + 1), jnp.float32),  # .normal_() in torch
        "bu":   s * jax.random.normal(ks[5], (1,), jnp.float32),
        "w_ih": s * jax.random.normal(ks[6], (4 * dh, 1), jnp.float32),
        "w_hh": s * jax.random.normal(ks[7], (4 * dh, dh), jnp.float32),
        "b_ih": s * jax.random.normal(ks[8], (4 * dh,), jnp.float32),
        "b_hh": s * jax.random.normal(ks[9], (4 * dh,), jnp.float32),
        "wo":   s * jax.random.normal(ks[10], (1, dh + eh), jnp.float32),
        "bo":   s * jax.random.normal(ks[11], (1,), jnp.float32),
    }


if __name__ == "__main__":
    B, T, DEC_HIDDEN, ENC_HIDDEN = 4, 9, 32, 32   # T-1 = 8 encoder/decoder steps
    key = jax.random.PRNGKey(0)
    kx, ky, kp = jax.random.split(key, 3)
    x = jax.random.normal(kx, (B, T - 1, ENC_HIDDEN), jnp.float32)
    y = jax.random.normal(ky, (B, T - 1), jnp.float32)
    params = init_params(kp, DEC_HIDDEN, ENC_HIDDEN)

    pred = decoder_rnn_pallas(params, x, y)
    jax.block_until_ready(pred)

    ref = decoder_rnn_ref(params, x, y, T, DEC_HIDDEN, ENC_HIDDEN)
    assert pred.shape == (B, 1)
    assert jnp.allclose(pred, ref, atol=1e-3, rtol=1e-3), (pred, ref)
    print("KERNEL_OK")
</pallas_src>

<mosaic_0001>
module attributes {stable_mosaic.version = 11 : i64} {
  func.func @decoder_rnn_kernel(%arg0: i32, %arg1: memref<8x256xf32, #tpu.memory_space<vmem>>, %arg2: memref<8x8xf32, #tpu.memory_space<vmem>>, %arg3: memref<256x272xf32, #tpu.memory_space<vmem>>, %arg4: memref<64x384xf32, #tpu.memory_space<vmem>>, %arg5: memref<256x8xf32, #tpu.memory_space<vmem>>, %arg6: memref<3x256xf32, #tpu.memory_space<vmem>>, %arg7: memref<8x128xf32, #tpu.memory_space<vmem>>) attributes {dimension_semantics = [#tpu.dimension_semantics<parallel>], iteration_bounds = array<i64: 1>, scalar_prefetch = 0 : i64, scratch_operands = 0 : i64, tpu.core_type = #tpu.core_type<tc>, window_params = [{transform_indices = @transform_0, window_bounds = array<i64: 8, 256>}, {transform_indices = @transform_1, window_bounds = array<i64: 8, 8>}, {pipeline_mode = #tpu.pipeline_mode<synchronous>, transform_indices = @transform_2, window_bounds = array<i64: 256, 272>}, {pipeline_mode = #tpu.pipeline_mode<synchronous>, transform_indices = @transform_3, window_bounds = array<i64: 64, 384>}, {pipeline_mode = #tpu.pipeline_mode<synchronous>, transform_indices = @transform_4, window_bounds = array<i64: 256, 8>}, {pipeline_mode = #tpu.pipeline_mode<synchronous>, transform_indices = @transform_5, window_bounds = array<i64: 3, 256>}, {transform_indices = @transform_6, window_bounds = array<i64: 8, 128>}]} {
    %c0 = arith.constant 0 : index
    %c0_0 = arith.constant 0 : index
    %0 = vector.load %arg1[%c0, %c0_0] : memref<8x256xf32, #tpu.memory_space<vmem>>, vector<8x256xf32>
    %c0_1 = arith.constant 0 : index
    %c0_2 = arith.constant 0 : index
    %1 = vector.load %arg2[%c0_1, %c0_2] : memref<8x8xf32, #tpu.memory_space<vmem>>, vector<8x8xf32>
    %c0_3 = arith.constant 0 : index
    %c0_4 = arith.constant 0 : index
    %2 = vector.load %arg3[%c0_3, %c0_4] : memref<256x272xf32, #tpu.memory_space<vmem>>, vector<256x272xf32>
    %c0_5 = arith.constant 0 : index
    %c0_6 = arith.constant 0 : index
    %3 = vector.load %arg4[%c0_5, %c0_6] : memref<64x384xf32, #tpu.memory_space<vmem>>, vector<64x384xf32>
    %c0_7 = arith.constant 0 : index
    %c0_8 = arith.constant 0 : index
    %4 = vector.load %arg5[%c0_7, %c0_8] : memref<256x8xf32, #tpu.memory_space<vmem>>, vector<256x8xf32>
    %c0_9 = arith.constant 0 : index
    %c0_10 = arith.constant 0 : index
    %5 = vector.load %arg6[%c0_9, %c0_10] : memref<3x256xf32, #tpu.memory_space<vmem>>, vector<1x256xf32>
    %c1 = arith.constant 1 : index
    %c0_11 = arith.constant 0 : index
    %6 = vector.load %arg6[%c1, %c0_11] : memref<3x256xf32, #tpu.memory_space<vmem>>, vector<1x128xf32>
    %c1_12 = arith.constant 1 : index
    %c128 = arith.constant 128 : index
    %7 = vector.load %arg6[%c1_12, %c128] : memref<3x256xf32, #tpu.memory_space<vmem>>, vector<1x32xf32>
    %c1_13 = arith.constant 1 : index
    %c160 = arith.constant 160 : index
    %8 = vector.load %arg6[%c1_13, %c160] : memref<3x256xf32, #tpu.memory_space<vmem>>, vector<1x1xf32>
    %c2 = arith.constant 2 : index
    %c0_14 = arith.constant 0 : index
    %9 = vector.load %arg6[%c2, %c0_14] : memref<3x256xf32, #tpu.memory_space<vmem>>, vector<1x128xf32>
    %cst = arith.constant dense<0.000000e+00> : vector<8x272xf32>
    %10 = tpu.matmul %0, %2, %cst {dimension_numbers = #tpu.dot_dimension_numbers<[1], [0], [0], [1], [0, 0, 1, 1], [], []>} : vector<8x256xf32>, vector<256x272xf32>, vector<8x272xf32> -> vector<8x272xf32>
    %11 = vector.extract_strided_slice %10 {offsets = [0, 0], sizes = [8, 256], strides = [1, 1]} : vector<8x272xf32> to vector<8x256xf32>
    %12 = vector.broadcast %5 : vector<1x256xf32> to vector<8x256xf32>
    %13 = arith.addf %11, %12 : vector<8x256xf32>
    %14 = vector.extract_strided_slice %10 {offsets = [0, 256], sizes = [8, 8], strides = [1, 1]} : vector<8x272xf32> to vector<8x8xf32>
    %15 = vector.extract_strided_slice %10 {offsets = [0, 264], sizes = [8, 8], strides = [1, 1]} : vector<8x272xf32> to vector<8x8xf32>
    %cst_15 = arith.constant 0.000000e+00 : f32
    %16 = vector.broadcast %cst_15 : f32 to vector<8x64xf32>
    %cst_16 = arith.constant 0.000000e+00 : f32
    %17 = vector.broadcast %cst_16 : f32 to vector<8x128xf32>
    %18 = math.tanh %13 : vector<8x256xf32>
    %cst_17 = arith.constant dense<0.000000e+00> : vector<8x8xf32>
    %19 = tpu.matmul %18, %4, %cst_17 {dimension_numbers = #tpu.dot_dimension_numbers<[1], [0], [0], [1], [0, 0, 1, 1], [], []>} : vector<8x256xf32>, vector<256x8xf32>, vector<8x8xf32> -> vector<8x8xf32>
    %cst_18 = arith.constant dense<0xFF800000> : vector<8xf32>
    %20 = vector.multi_reduction <maximumf>, %19, %cst_18 [1] : vector<8x8xf32> to vector<8xf32>
    %21 = vector.shape_cast %20 : vector<8xf32> to vector<8x1xf32>
    %22 = vector.broadcast %21 : vector<8x1xf32> to vector<8x8xf32>
    %23 = arith.subf %19, %22 : vector<8x8xf32>
    %24 = math.exp %23 : vector<8x8xf32>
    %cst_19 = arith.constant dense<0.000000e+00> : vector<8xf32>
    %25 = vector.multi_reduction <add>, %24, %cst_19 [1] : vector<8x8xf32> to vector<8xf32>
    %26 = vector.shape_cast %25 : vector<8xf32> to vector<8x1xf32>
    %27 = vector.broadcast %26 : vector<8x1xf32> to vector<8x8xf32>
    %28 = arith.divf %24, %27 : vector<8x8xf32>
    %29 = arith.mulf %28, %14 : vector<8x8xf32>
    %cst_20 = arith.constant dense<0.000000e+00> : vector<8xf32>
    %30 = vector.multi_reduction <add>, %29, %cst_20 [1] : vector<8x8xf32> to vector<8xf32>
    %31 = vector.shape_cast %30 : vector<8xf32> to vector<8x1xf32>
    %32 = vector.extract_strided_slice %1 {offsets = [0, 0], sizes = [8, 1], strides = [1, 1]} : vector<8x8xf32> to vector<8x1xf32>
    %33 = arith.addf %31, %32 : vector<8x1xf32>
    %34 = vector.broadcast %33 : vector<8x1xf32> to vector<8x128xf32>
    %35 = vector.broadcast %6 : vector<1x128xf32> to vector<8x128xf32>
    %36 = arith.mulf %34, %35 : vector<8x128xf32>
    %37 = arith.addf %36, %17 : vector<8x128xf32>
    %38 = vector.broadcast %9 : vector<1x128xf32> to vector<8x128xf32>
    %39 = arith.addf %37, %38 : vector<8x128xf32>
    %40 = arith.negf %39 : vector<8x128xf32>
    %41 = math.exp %40 : vector<8x128xf32>
    %cst_21 = arith.constant 1.000000e+00 : f32
    %42 = vector.broadcast %cst_21 : f32 to vector<8x128xf32>
    %43 = arith.addf %42, %41 : vector<8x128xf32>
    %44 = arith.divf %42, %43 : vector<8x128xf32>
    %45 = vector.extract_strided_slice %44 {offsets = [0, 0], sizes = [8, 32], strides = [1, 1]} : vector<8x128xf32> to vector<8x32xf32>
    %46 = vector.extract_strided_slice %44 {offsets = [0, 32], sizes = [8, 32], strides = [1, 1]} : vector<8x128xf32> to vector<8x32xf32>
    %47 = vector.extract_strided_slice %44 {offsets = [0, 96], sizes = [8, 32], strides = [1, 1]} : vector<8x128xf32> to vector<8x32xf32>
    %48 = vector.extract_strided_slice %39 {offsets = [0, 64], sizes = [8, 32], strides = [1, 1]} : vector<8x128xf32> to vector<8x32xf32>
    %49 = math.tanh %48 : vector<8x32xf32>
    %50 = vector.extract_strided_slice %16 {offsets = [0, 32], sizes = [8, 32], strides = [1, 1]} : vector<8x64xf32> to vector<8x32xf32>
    %51 = arith.mulf %46, %50 : vector<8x32xf32>
    %52 = arith.mulf %45, %49 : vector<8x32xf32>
    %53 = arith.addf %51, %52 : vector<8x32xf32>
    %54 = math.tanh %53 : vector<8x32xf32>
    %55 = arith.mulf %47, %54 : vector<8x32xf32>
    %56 = tpu.concatenate %55, %53 in 1 : vector<8x32xf32>, vector<8x32xf32> -> vector<8x64xf32>
    %cst_22 = arith.constant dense<0.000000e+00> : vector<8x384xf32>
    %57 = tpu.matmul %56, %3, %cst_22 {dimension_numbers = #tpu.dot_dimension_numbers<[1], [0], [0], [1], [0, 0, 1, 1], [], []>} : vector<8x64xf32>, vector<64x384xf32>, vector<8x384xf32> -> vector<8x384xf32>
    %58 = vector.extract_strided_slice %57 {offsets = [0, 0], sizes = [8, 256], strides = [1, 1]} : vector<8x384xf32> to vector<8x256xf32>
    %59 = arith.addf %58, %13 : vector<8x256xf32>
    %60 = vector.extract_strided_slice %57 {offsets = [0, 256], sizes = [8, 128], strides = [1, 1]} : vector<8x384xf32> to vector<8x128xf32>
    %61 = math.tanh %59 : vector<8x256xf32>
    %cst_23 = arith.constant dense<0.000000e+00> : vector<8x8xf32>
    %62 = tpu.matmul %61, %4, %cst_23 {dimension_numbers = #tpu.dot_dimension_numbers<[1], [0], [0], [1], [0, 0, 1, 1], [], []>} : vector<8x256xf32>, vector<256x8xf32>, vector<8x8xf32> -> vector<8x8xf32>
    %cst_24 = arith.constant dense<0xFF800000> : vector<8xf32>
    %63 = vector.multi_reduction <maximumf>, %62, %cst_24 [1] : vector<8x8xf32> to vector<8xf32>
    %64 = vector.shape_cast %63 : vector<8xf32> to vector<8x1xf32>
    %65 = vector.broadcast %64 : vector<8x1xf32> to vector<8x8xf32>
    %66 = arith.subf %62, %65 : vector<8x8xf32>
    %67 = math.exp %66 : vector<8x8xf32>
    %cst_25 = arith.constant dense<0.000000e+00> : vector<8xf32>
    %68 = vector.multi_reduction <add>, %67, %cst_25 [1] : vector<8x8xf32> to vector<8xf32>
    %69 = vector.shape_cast %68 : vector<8xf32> to vector<8x1xf32>
    %70 = vector.broadcast %69 : vector<8x1xf32> to vector<8x8xf32>
    %71 = arith.divf %67, %70 : vector<8x8xf32>
    %72 = arith.mulf %71, %14 : vector<8x8xf32>
    %cst_26 = arith.constant dense<0.000000e+00> : vector<8xf32>
    %73 = vector.multi_reduction <add>, %72, %cst_26 [1] : vector<8x8xf32> to vector<8xf32>
    %74 = vector.shape_cast %73 : vector<8xf32> to vector<8x1xf32>
    %75 = vector.extract_strided_slice %1 {offsets = [0, 1], sizes = [8, 1], strides = [1, 1]} : vector<8x8xf32> to vector<8x1xf32>
    %76 = arith.addf %74, %75 : vector<8x1xf32>
    %77 = vector.broadcast %76 : vector<8x1xf32> to vector<8x128xf32>
    %78 = vector.broadcast %6 : vector<1x128xf32> to vector<8x128xf32>
    %79 = arith.mulf %77, %78 : vector<8x128xf32>
    %80 = arith.addf %79, %60 : vector<8x128xf32>
    %81 = vector.broadcast %9 : vector<1x128xf32> to vector<8x128xf32>
    %82 = arith.addf %80, %81 : vector<8x128xf32>
    %83 = arith.negf %82 : vector<8x128xf32>
    %84 = math.exp %83 : vector<8x128xf32>
    %cst_27 = arith.constant 1.000000e+00 : f32
    %85 = vector.broadcast %cst_27 : f32 to vector<8x128xf32>
    %86 = arith.addf %85, %84 : vector<8x128xf32>
    %87 = arith.divf %85, %86 : vector<8x128xf32>
    %88 = vector.extract_strided_slice %87 {offsets = [0, 0], sizes = [8, 32], strides = [1, 1]} : vector<8x128xf32> to vector<8x32xf32>
    %89 = vector.extract_strided_slice %87 {offsets = [0, 32], sizes = [8, 32], strides = [1, 1]} : vector<8x128xf32> to vector<8x32xf32>
    %90 = vector.extract_strided_slice %87 {offsets = [0, 96], sizes = [8, 32], strides = [1, 1]} : vector<8x128xf32> to vector<8x32xf32>
    %91 = vector.extract_strided_slice %82 {offsets = [0, 64], sizes = [8, 32], strides = [1, 1]} : vector<8x128xf32> to vector<8x32xf32>
    %92 = math.tanh %91 : vector<8x32xf32>
    %93 = vector.extract_strided_slice %56 {offsets = [0, 32], sizes = [8, 32], strides = [1, 1]} : vector<8x64xf32> to vector<8x32xf32>
    %94 = arith.mulf %89, %93 : vector<8x32xf32>
    %95 = arith.mulf %88, %92 : vector<8x32xf32>
    %96 = arith.addf %94, %95 : vector<8x32xf32>
    %97 = math.tanh %96 : vector<8x32xf32>
    %98 = arith.mulf %90, %97 : vector<8x32xf32>
    %99 = tpu.concatenate %98, %96 in 1 : vector<8x32xf32>, vector<8x32xf32> -> vector<8x64xf32>
    %cst_28 = arith.constant dense<0.000000e+00> : vector<8x384xf32>
    %100 = tpu.matmul %99, %3, %cst_28 {dimension_numbers = #tpu.dot_dimension_numbers<[1], [0], [0], [1], [0, 0, 1, 1], [], []>} : vector<8x64xf32>, vector<64x384xf32>, vector<8x384xf32> -> vector<8x384xf32>
    %101 = vector.extract_strided_slice %100 {offsets = [0, 0], sizes = [8, 256], strides = [1, 1]} : vector<8x384xf32> to vector<8x256xf32>
    %102 = arith.addf %101, %13 : vector<8x256xf32>
    %103 = vector.extract_strided_slice %100 {offsets = [0, 256], sizes = [8, 128], strides = [1, 1]} : vector<8x384xf32> to vector<8x128xf32>
    %104 = math.tanh %102 : vector<8x256xf32>
    %cst_29 = arith.constant dense<0.000000e+00> : vector<8x8xf32>
    %105 = tpu.matmul %104, %4, %cst_29 {dimension_numbers = #tpu.dot_dimension_numbers<[1], [0], [0], [1], [0, 0, 1, 1], [], []>} : vector<8x256xf32>, vector<256x8xf32>, vector<8x8xf32> -> vector<8x8xf32>
    %cst_30 = arith.constant dense<0xFF800000> : vector<8xf32>
    %106 = vector.multi_reduction <maximumf>, %105, %cst_30 [1] : vector<8x8xf32> to vector<8xf32>
    %107 = vector.shape_cast %106 : vector<8xf32> to vector<8x1xf32>
    %108 = vector.broadcast %107 : vector<8x1xf32> to vector<8x8xf32>
    %109 = arith.subf %105, %108 : vector<8x8xf32>
    %110 = math.exp %109 : vector<8x8xf32>
    %cst_31 = arith.constant dense<0.000000e+00> : vector<8xf32>
    %111 = vector.multi_reduction <add>, %110, %cst_31 [1] : vector<8x8xf32> to vector<8xf32>
    %112 = vector.shape_cast %111 : vector<8xf32> to vector<8x1xf32>
    %113 = vector.broadcast %112 : vector<8x1xf32> to vector<8x8xf32>
    %114 = arith.divf %110, %113 : vector<8x8xf32>
    %115 = arith.mulf %114, %14 : vector<8x8xf32>
    %cst_32 = arith.constant dense<0.000000e+00> : vector<8xf32>
    %116 = vector.multi_reduction <add>, %115, %cst_32 [1] : vector<8x8xf32> to vector<8xf32>
    %117 = vector.shape_cast %116 : vector<8xf32> to vector<8x1xf32>
    %118 = vector.extract_strided_slice %1 {offsets = [0, 2], sizes = [8, 1], strides = [1, 1]} : vector<8x8xf32> to vector<8x1xf32>
    %119 = arith.addf %117, %118 : vector<8x1xf32>
    %120 = vector.broadcast %119 : vector<8x1xf32> to vector<8x128xf32>
    %121 = vector.broadcast %6 : vector<1x128xf32> to vector<8x128xf32>
    %122 = arith.mulf %120, %121 : vector<8x128xf32>
    %123 = arith.addf %122, %103 : vector<8x128xf32>
    %124 = vector.broadcast %9 : vector<1x128xf32> to vector<8x128xf32>
    %125 = arith.addf %123, %124 : vector<8x128xf32>
    %126 = arith.negf %125 : vector<8x128xf32>
    %127 = math.exp %126 : vector<8x128xf32>
    %cst_33 = arith.constant 1.000000e+00 : f32
    %128 = vector.broadcast %cst_33 : f32 to vector<8x128xf32>
    %129 = arith.addf %128, %127 : vector<8x128xf32>
    %130 = arith.divf %128, %129 : vector<8x128xf32>
    %131 = vector.extract_strided_slice %130 {offsets = [0, 0], sizes = [8, 32], strides = [1, 1]} : vector<8x128xf32> to vector<8x32xf32>
    %132 = vector.extract_strided_slice %130 {offsets = [0, 32], sizes = [8, 32], strides = [1, 1]} : vector<8x128xf32> to vector<8x32xf32>
    %133 = vector.extract_strided_slice %130 {offsets = [0, 96], sizes = [8, 32], strides = [1, 1]} : vector<8x128xf32> to vector<8x32xf32>
    %134 = vector.extract_strided_slice %125 {offsets = [0, 64], sizes = [8, 32], strides = [1, 1]} : vector<8x128xf32> to vector<8x32xf32>
    %135 = math.tanh %134 : vector<8x32xf32>
    %136 = vector.extract_strided_slice %99 {offsets = [0, 32], sizes = [8, 32], strides = [1, 1]} : vector<8x64xf32> to vector<8x32xf32>
    %137 = arith.mulf %132, %136 : vector<8x32xf32>
    %138 = arith.mulf %131, %135 : vector<8x32xf32>
    %139 = arith.addf %137, %138 : vector<8x32xf32>
    %140 = math.tanh %139 : vector<8x32xf32>
    %141 = arith.mulf %133, %140 : vector<8x32xf32>
    %142 = tpu.concatenate %141, %139 in 1 : vector<8x32xf32>, vector<8x32xf32> -> vector<8x64xf32>
    %cst_34 = arith.constant dense<0.000000e+00> : vector<8x384xf32>
    %143 = tpu.matmul %142, %3, %cst_34 {dimension_numbers = #tpu.dot_dimension_numbers<[1], [0], [0], [1], [0, 0, 1, 1], [], []>} : vector<8x64xf32>, vector<64x384xf32>, vector<8x384xf32> -> vector<8x384xf32>
    %144 = vector.extract_strided_slice %143 {offsets = [0, 0], sizes = [8, 256], strides = [1, 1]} : vector<8x384xf32> to vector<8x256xf32>
    %145 = arith.addf %144, %13 : vector<8x256xf32>
    %146 = vector.extract_strided_slice %143 {offsets = [0, 256], sizes = [8, 128], strides = [1, 1]} : vector<8x384xf32> to vector<8x128xf32>
    %147 = math.tanh %145 : vector<8x256xf32>
    %cst_35 = arith.constant dense<0.000000e+00> : vector<8x8xf32>
    %148 = tpu.matmul %147, %4, %cst_35 {dimension_numbers = #tpu.dot_dimension_numbers<[1], [0], [0], [1], [0, 0, 1, 1], [], []>} : vector<8x256xf32>, vector<256x8xf32>, vector<8x8xf32> -> vector<8x8xf32>
    %cst_36 = arith.constant dense<0xFF800000> : vector<8xf32>
    %149 = vector.multi_reduction <maximumf>, %148, %cst_36 [1] : vector<8x8xf32> to vector<8xf32>
    %150 = vector.shape_cast %149 : vector<8xf32> to vector<8x1xf32>
    %151 = vector.broadcast %150 : vector<8x1xf32> to vector<8x8xf32>
    %152 = arith.subf %148, %151 : vector<8x8xf32>
    %153 = math.exp %152 : vector<8x8xf32>
    %cst_37 = arith.constant dense<0.000000e+00> : vector<8xf32>
    %154 = vector.multi_reduction <add>, %153, %cst_37 [1] : vector<8x8xf32> to vector<8xf32>
    %155 = vector.shape_cast %154 : vector<8xf32> to vector<8x1xf32>
    %156 = vector.broadcast %155 : vector<8x1xf32> to vector<8x8xf32>
    %157 = arith.divf %153, %156 : vector<8x8xf32>
    %158 = arith.mulf %157, %14 : vector<8x8xf32>
    %cst_38 = arith.constant dense<0.000000e+00> : vector<8xf32>
    %159 = vector.multi_reduction <add>, %158, %cst_38 [1] : vector<8x8xf32> to vector<8xf32>
    %160 = vector.shape_cast %159 : vector<8xf32> to vector<8x1xf32>
    %161 = vector.extract_strided_slice %1 {offsets = [0, 3], sizes = [8, 1], strides = [1, 1]} : vector<8x8xf32> to vector<8x1xf32>
    %162 = arith.addf %160, %161 : vector<8x1xf32>
    %163 = vector.broadcast %162 : vector<8x1xf32> to vector<8x128xf32>
    %164 = vector.broadcast %6 : vector<1x128xf32> to vector<8x128xf32>
    %165 = arith.mulf %163, %164 : vector<8x128xf32>
    %166 = arith.addf %165, %146 : vector<8x128xf32>
    %167 = vector.broadcast %9 : vector<1x128xf32> to vector<8x128xf32>
    %168 = arith.addf %166, %167 : vector<8x128xf32>
    %169 = arith.negf %168 : vector<8x128xf32>
    %170 = math.exp %169 : vector<8x128xf32>
    %cst_39 = arith.constant 1.000000e+00 : f32
    %171 = vector.broadcast %cst_39 : f32 to vector<8x128xf32>
    %172 = arith.addf %171, %170 : vector<8x128xf32>
    %173 = arith.divf %171, %172 : vector<8x128xf32>
    %174 = vector.extract_strided_slice %173 {offsets = [0, 0], sizes = [8, 32], strides = [1, 1]} : vector<8x128xf32> to vector<8x32xf32>
    %175 = vector.extract_strided_slice %173 {offsets = [0, 32], sizes = [8, 32], strides = [1, 1]} : vector<8x128xf32> to vector<8x32xf32>
    %176 = vector.extract_strided_slice %173 {offsets = [0, 96], sizes = [8, 32], strides = [1, 1]} : vector<8x128xf32> to vector<8x32xf32>
    %177 = vector.extract_strided_slice %168 {offsets = [0, 64], sizes = [8, 32], strides = [1, 1]} : vector<8x128xf32> to vector<8x32xf32>
    %178 = math.tanh %177 : vector<8x32xf32>
    %179 = vector.extract_strided_slice %142 {offsets = [0, 32], sizes = [8, 32], strides = [1, 1]} : vector<8x64xf32> to vector<8x32xf32>
    %180 = arith.mulf %175, %179 : vector<8x32xf32>
    %181 = arith.mulf %174, %178 : vector<8x32xf32>
    %182 = arith.addf %180, %181 : vector<8x32xf32>
    %183 = math.tanh %182 : vector<8x32xf32>
    %184 = arith.mulf %176, %183 : vector<8x32xf32>
    %185 = tpu.concatenate %184, %182 in 1 : vector<8x32xf32>, vector<8x32xf32> -> vector<8x64xf32>
    %cst_40 = arith.constant dense<0.000000e+00> : vector<8x384xf32>
    %186 = tpu.matmul %185, %3, %cst_40 {dimension_numbers = #tpu.dot_dimension_numbers<[1], [0], [0], [1], [0, 0, 1, 1], [], []>} : vector<8x64xf32>, vector<64x384xf32>, vector<8x384xf32> -> vector<8x384xf32>
    %187 = vector.extract_strided_slice %186 {offsets = [0, 0], sizes = [8, 256], strides = [1, 1]} : vector<8x384xf32> to vector<8x256xf32>
    %188 = arith.addf %187, %13 : vector<8x256xf32>
    %189 = vector.extract_strided_slice %186 {offsets = [0, 256], sizes = [8, 128], strides = [1, 1]} : vector<8x384xf32> to vector<8x128xf32>
    %190 = math.tanh %188 : vector<8x256xf32>
    %cst_41 = arith.constant dense<0.000000e+00> : vector<8x8xf32>
    %191 = tpu.matmul %190, %4, %cst_41 {dimension_numbers = #tpu.dot_dimension_numbers<[1], [0], [0], [1], [0, 0, 1, 1], [], []>} : vector<8x256xf32>, vector<256x8xf32>, vector<8x8xf32> -> vector<8x8xf32>
    %cst_42 = arith.constant dense<0xFF800000> : vector<8xf32>
    %192 = vector.multi_reduction <maximumf>, %191, %cst_42 [1] : vector<8x8xf32> to vector<8xf32>
    %193 = vector.shape_cast %192 : vector<8xf32> to vector<8x1xf32>
    %194 = vector.broadcast %193 : vector<8x1xf32> to vector<8x8xf32>
    %195 = arith.subf %191, %194 : vector<8x8xf32>
    %196 = math.exp %195 : vector<8x8xf32>
    %cst_43 = arith.constant dense<0.000000e+00> : vector<8xf32>
    %197 = vector.multi_reduction <add>, %196, %cst_43 [1] : vector<8x8xf32> to vector<8xf32>
    %198 = vector.shape_cast %197 : vector<8xf32> to vector<8x1xf32>
    %199 = vector.broadcast %198 : vector<8x1xf32> to vector<8x8xf32>
    %200 = arith.divf %196, %199 : vector<8x8xf32>
    %201 = arith.mulf %200, %14 : vector<8x8xf32>
    %cst_44 = arith.constant dense<0.000000e+00> : vector<8xf32>
    %202 = vector.multi_reduction <add>, %201, %cst_44 [1] : vector<8x8xf32> to vector<8xf32>
    %203 = vector.shape_cast %202 : vector<8xf32> to vector<8x1xf32>
    %204 = vector.extract_strided_slice %1 {offsets = [0, 4], sizes = [8, 1], strides = [1, 1]} : vector<8x8xf32> to vector<8x1xf32>
    %205 = arith.addf %203, %204 : vector<8x1xf32>
    %206 = vector.broadcast %205 : vector<8x1xf32> to vector<8x128xf32>
    %207 = vector.broadcast %6 : vector<1x128xf32> to vector<8x128xf32>
    %208 = arith.mulf %206, %207 : vector<8x128xf32>
    %209 = arith.addf %208, %189 : vector<8x128xf32>
    %210 = vector.broadcast %9 : vector<1x128xf32> to vector<8x128xf32>
    %211 = arith.addf %209, %210 : vector<8x128xf32>
    %212 = arith.negf %211 : vector<8x128xf32>
    %213 = math.exp %212 : vector<8x128xf32>
    %cst_45 = arith.constant 1.000000e+00 : f32
    %214 = vector.broadcast %cst_45 : f32 to vector<8x128xf32>
    %215 = arith.addf %214, %213 : vector<8x128xf32>
    %216 = arith.divf %214, %215 : vector<8x128xf32>
    %217 = vector.extract_strided_slice %216 {offsets = [0, 0], sizes = [8, 32], strides = [1, 1]} : vector<8x128xf32> to vector<8x32xf32>
    %218 = vector.extract_strided_slice %216 {offsets = [0, 32], sizes = [8, 32], strides = [1, 1]} : vector<8x128xf32> to vector<8x32xf32>
    %219 = vector.extract_strided_slice %216 {offsets = [0, 96], sizes = [8, 32], strides = [1, 1]} : vector<8x128xf32> to vector<8x32xf32>
    %220 = vector.extract_strided_slice %211 {offsets = [0, 64], sizes = [8, 32], strides = [1, 1]} : vector<8x128xf32> to vector<8x32xf32>
    %221 = math.tanh %220 : vector<8x32xf32>
    %222 = vector.extract_strided_slice %185 {offsets = [0, 32], sizes = [8, 32], strides = [1, 1]} : vector<8x64xf32> to vector<8x32xf32>
    %223 = arith.mulf %218, %222 : vector<8x32xf32>
    %224 = arith.mulf %217, %221 : vector<8x32xf32>
    %225 = arith.addf %223, %224 : vector<8x32xf32>
    %226 = math.tanh %225 : vector<8x32xf32>
    %227 = arith.mulf %219, %226 : vector<8x32xf32>
    %228 = tpu.concatenate %227, %225 in 1 : vector<8x32xf32>, vector<8x32xf32> -> vector<8x64xf32>
    %cst_46 = arith.constant dense<0.000000e+00> : vector<8x384xf32>
    %229 = tpu.matmul %228, %3, %cst_46 {dimension_numbers = #tpu.dot_dimension_numbers<[1], [0], [0], [1], [0, 0, 1, 1], [], []>} : vector<8x64xf32>, vector<64x384xf32>, vector<8x384xf32> -> vector<8x384xf32>
    %230 = vector.extract_strided_slice %229 {offsets = [0, 0], sizes = [8, 256], strides = [1, 1]} : vector<8x384xf32> to vector<8x256xf32>
    %231 = arith.addf %230, %13 : vector<8x256xf32>
    %232 = vector.extract_strided_slice %229 {offsets = [0, 256], sizes = [8, 128], strides = [1, 1]} : vector<8x384xf32> to vector<8x128xf32>
    %233 = math.tanh %231 : vector<8x256xf32>
    %cst_47 = arith.constant dense<0.000000e+00> : vector<8x8xf32>
    %234 = tpu.matmul %233, %4, %cst_47 {dimension_numbers = #tpu.dot_dimension_numbers<[1], [0], [0], [1], [0, 0, 1, 1], [], []>} : vector<8x256xf32>, vector<256x8xf32>, vector<8x8xf32> -> vector<8x8xf32>
    %cst_48 = arith.constant dense<0xFF800000> : vector<8xf32>
    %235 = vector.multi_reduction <maximumf>, %234, %cst_48 [1] : vector<8x8xf32> to vector<8xf32>
    %236 = vector.shape_cast %235 : vector<8xf32> to vector<8x1xf32>
    %237 = vector.broadcast %236 : vector<8x1xf32> to vector<8x8xf32>
    %238 = arith.subf %234, %237 : vector<8x8xf32>
    %239 = math.exp %238 : vector<8x8xf32>
    %cst_49 = arith.constant dense<0.000000e+00> : vector<8xf32>
    %240 = vector.multi_reduction <add>, %239, %cst_49 [1] : vector<8x8xf32> to vector<8xf32>
    %241 = vector.shape_cast %240 : vector<8xf32> to vector<8x1xf32>
    %242 = vector.broadcast %241 : vector<8x1xf32> to vector<8x8xf32>
    %243 = arith.divf %239, %242 : vector<8x8xf32>
    %244 = arith.mulf %243, %14 : vector<8x8xf32>
    %cst_50 = arith.constant dense<0.000000e+00> : vector<8xf32>
    %245 = vector.multi_reduction <add>, %244, %cst_50 [1] : vector<8x8xf32> to vector<8xf32>
    %246 = vector.shape_cast %245 : vector<8xf32> to vector<8x1xf32>
    %247 = vector.extract_strided_slice %1 {offsets = [0, 5], sizes = [8, 1], strides = [1, 1]} : vector<8x8xf32> to vector<8x1xf32>
    %248 = arith.addf %246, %247 : vector<8x1xf32>
    %249 = vector.broadcast %248 : vector<8x1xf32> to vector<8x128xf32>
    %250 = vector.broadcast %6 : vector<1x128xf32> to vector<8x128xf32>
    %251 = arith.mulf %249, %250 : vector<8x128xf32>
    %252 = arith.addf %251, %232 : vector<8x128xf32>
    %253 = vector.broadcast %9 : vector<1x128xf32> to vector<8x128xf32>
    %254 = arith.addf %252, %253 : vector<8x128xf32>
    %255 = arith.negf %254 : vector<8x128xf32>
    %256 = math.exp %255 : vector<8x128xf32>
    %cst_51 = arith.constant 1.000000e+00 : f32
    %257 = vector.broadcast %cst_51 : f32 to vector<8x128xf32>
    %258 = arith.addf %257, %256 : vector<8x128xf32>
    %259 = arith.divf %257, %258 : vector<8x128xf32>
    %260 = vector.extract_strided_slice %259 {offsets = [0, 0], sizes = [8, 32], strides = [1, 1]} : vector<8x128xf32> to vector<8x32xf32>
    %261 = vector.extract_strided_slice %259 {offsets = [0, 32], sizes = [8, 32], strides = [1, 1]} : vector<8x128xf32> to vector<8x32xf32>
    %262 = vector.extract_strided_slice %259 {offsets = [0, 96], sizes = [8, 32], strides = [1, 1]} : vector<8x128xf32> to vector<8x32xf32>
    %263 = vector.extract_strided_slice %254 {offsets = [0, 64], sizes = [8, 32], strides = [1, 1]} : vector<8x128xf32> to vector<8x32xf32>
    %264 = math.tanh %263 : vector<8x32xf32>
    %265 = vector.extract_strided_slice %228 {offsets = [0, 32], sizes = [8, 32], strides = [1, 1]} : vector<8x64xf32> to vector<8x32xf32>
    %266 = arith.mulf %261, %265 : vector<8x32xf32>
    %267 = arith.mulf %260, %264 : vector<8x32xf32>
    %268 = arith.addf %266, %267 : vector<8x32xf32>
    %269 = math.tanh %268 : vector<8x32xf32>
    %270 = arith.mulf %262, %269 : vector<8x32xf32>
    %271 = tpu.concatenate %270, %268 in 1 : vector<8x32xf32>, vector<8x32xf32> -> vector<8x64xf32>
    %cst_52 = arith.constant dense<0.000000e+00> : vector<8x384xf32>
    %272 = tpu.matmul %271, %3, %cst_52 {dimension_numbers = #tpu.dot_dimension_numbers<[1], [0], [0], [1], [0, 0, 1, 1], [], []>} : vector<8x64xf32>, vector<64x384xf32>, vector<8x384xf32> -> vector<8x384xf32>
    %273 = vector.extract_strided_slice %272 {offsets = [0, 0], sizes = [8, 256], strides = [1, 1]} : vector<8x384xf32> to vector<8x256xf32>
    %274 = arith.addf %273, %13 : vector<8x256xf32>
    %275 = vector.extract_strided_slice %272 {offsets = [0, 256], sizes = [8, 128], strides = [1, 1]} : vector<8x384xf32> to vector<8x128xf32>
    %276 = math.tanh %274 : vector<8x256xf32>
    %cst_53 = arith.constant dense<0.000000e+00> : vector<8x8xf32>
    %277 = tpu.matmul %276, %4, %cst_53 {dimension_numbers = #tpu.dot_dimension_numbers<[1], [0], [0], [1], [0, 0, 1, 1], [], []>} : vector<8x256xf32>, vector<256x8xf32>, vector<8x8xf32> -> vector<8x8xf32>
    %cst_54 = arith.constant dense<0xFF800000> : vector<8xf32>
    %278 = vector.multi_reduction <maximumf>, %277, %cst_54 [1] : vector<8x8xf32> to vector<8xf32>
    %279 = vector.shape_cast %278 : vector<8xf32> to vector<8x1xf32>
    %280 = vector.broadcast %279 : vector<8x1xf32> to vector<8x8xf32>
    %281 = arith.subf %277, %280 : vector<8x8xf32>
    %282 = math.exp %281 : vector<8x8xf32>
    %cst_55 = arith.constant dense<0.000000e+00> : vector<8xf32>
    %283 = vector.multi_reduction <add>, %282, %cst_55 [1] : vector<8x8xf32> to vector<8xf32>
    %284 = vector.shape_cast %283 : vector<8xf32> to vector<8x1xf32>
    %285 = vector.broadcast %284 : vector<8x1xf32> to vector<8x8xf32>
    %286 = arith.divf %282, %285 : vector<8x8xf32>
    %287 = arith.mulf %286, %14 : vector<8x8xf32>
    %cst_56 = arith.constant dense<0.000000e+00> : vector<8xf32>
    %288 = vector.multi_reduction <add>, %287, %cst_56 [1] : vector<8x8xf32> to vector<8xf32>
    %289 = vector.shape_cast %288 : vector<8xf32> to vector<8x1xf32>
    %290 = vector.extract_strided_slice %1 {offsets = [0, 6], sizes = [8, 1], strides = [1, 1]} : vector<8x8xf32> to vector<8x1xf32>
    %291 = arith.addf %289, %290 : vector<8x1xf32>
    %292 = vector.broadcast %291 : vector<8x1xf32> to vector<8x128xf32>
    %293 = vector.broadcast %6 : vector<1x128xf32> to vector<8x128xf32>
    %294 = arith.mulf %292, %293 : vector<8x128xf32>
    %295 = arith.addf %294, %275 : vector<8x128xf32>
    %296 = vector.broadcast %9 : vector<1x128xf32> to vector<8x128xf32>
    %297 = arith.addf %295, %296 : vector<8x128xf32>
    %298 = arith.negf %297 : vector<8x128xf32>
    %299 = math.exp %298 : vector<8x128xf32>
    %cst_57 = arith.constant 1.000000e+00 : f32
    %300 = vector.broadcast %cst_57 : f32 to vector<8x128xf32>
    %301 = arith.addf %300, %299 : vector<8x128xf32>
    %302 = arith.divf %300, %301 : vector<8x128xf32>
    %303 = vector.extract_strided_slice %302 {offsets = [0, 0], sizes = [8, 32], strides = [1, 1]} : vector<8x128xf32> to vector<8x32xf32>
    %304 = vector.extract_strided_slice %302 {offsets = [0, 32], sizes = [8, 32], strides = [1, 1]} : vector<8x128xf32> to vector<8x32xf32>
    %305 = vector.extract_strided_slice %302 {offsets = [0, 96], sizes = [8, 32], strides = [1, 1]} : vector<8x128xf32> to vector<8x32xf32>
    %306 = vector.extract_strided_slice %297 {offsets = [0, 64], sizes = [8, 32], strides = [1, 1]} : vector<8x128xf32> to vector<8x32xf32>
    %307 = math.tanh %306 : vector<8x32xf32>
    %308 = vector.extract_strided_slice %271 {offsets = [0, 32], sizes = [8, 32], strides = [1, 1]} : vector<8x64xf32> to vector<8x32xf32>
    %309 = arith.mulf %304, %308 : vector<8x32xf32>
    %310 = arith.mulf %303, %307 : vector<8x32xf32>
    %311 = arith.addf %309, %310 : vector<8x32xf32>
    %312 = math.tanh %311 : vector<8x32xf32>
    %313 = arith.mulf %305, %312 : vector<8x32xf32>
    %314 = tpu.concatenate %313, %311 in 1 : vector<8x32xf32>, vector<8x32xf32> -> vector<8x64xf32>
    %cst_58 = arith.constant dense<0.000000e+00> : vector<8x384xf32>
    %315 = tpu.matmul %314, %3, %cst_58 {dimension_numbers = #tpu.dot_dimension_numbers<[1], [0], [0], [1], [0, 0, 1, 1], [], []>} : vector<8x64xf32>, vector<64x384xf32>, vector<8x384xf32> -> vector<8x384xf32>
    %316 = vector.extract_strided_slice %315 {offsets = [0, 0], sizes = [8, 256], strides = [1, 1]} : vector<8x384xf32> to vector<8x256xf32>
    %317 = arith.addf %316, %13 : vector<8x256xf32>
    %318 = vector.extract_strided_slice %315 {offsets = [0, 256], sizes = [8, 128], strides = [1, 1]} : vector<8x384xf32> to vector<8x128xf32>
    %319 = math.tanh %317 : vector<8x256xf32>
    %cst_59 = arith.constant dense<0.000000e+00> : vector<8x8xf32>
    %320 = tpu.matmul %319, %4, %cst_59 {dimension_numbers = #tpu.dot_dimension_numbers<[1], [0], [0], [1], [0, 0, 1, 1], [], []>} : vector<8x256xf32>, vector<256x8xf32>, vector<8x8xf32> -> vector<8x8xf32>
    %cst_60 = arith.constant dense<0xFF800000> : vector<8xf32>
    %321 = vector.multi_reduction <maximumf>, %320, %cst_60 [1] : vector<8x8xf32> to vector<8xf32>
    %322 = vector.shape_cast %321 : vector<8xf32> to vector<8x1xf32>
    %323 = vector.broadcast %322 : vector<8x1xf32> to vector<8x8xf32>
    %324 = arith.subf %320, %323 : vector<8x8xf32>
    %325 = math.exp %324 : vector<8x8xf32>
    %cst_61 = arith.constant dense<0.000000e+00> : vector<8xf32>
    %326 = vector.multi_reduction <add>, %325, %cst_61 [1] : vector<8x8xf32> to vector<8xf32>
    %327 = vector.shape_cast %326 : vector<8xf32> to vector<8x1xf32>
    %328 = vector.broadcast %327 : vector<8x1xf32> to vector<8x8xf32>
    %329 = arith.divf %325, %328 : vector<8x8xf32>
    %330 = arith.mulf %329, %14 : vector<8x8xf32>
    %cst_62 = arith.constant dense<0.000000e+00> : vector<8xf32>
    %331 = vector.multi_reduction <add>, %330, %cst_62 [1] : vector<8x8xf32> to vector<8xf32>
    %332 = vector.shape_cast %331 : vector<8xf32> to vector<8x1xf32>
    %333 = vector.extract_strided_slice %1 {offsets = [0, 7], sizes = [8, 1], strides = [1, 1]} : vector<8x8xf32> to vector<8x1xf32>
    %334 = arith.addf %332, %333 : vector<8x1xf32>
    %335 = vector.broadcast %334 : vector<8x1xf32> to vector<8x128xf32>
    %336 = vector.broadcast %6 : vector<1x128xf32> to vector<8x128xf32>
    %337 = arith.mulf %335, %336 : vector<8x128xf32>
    %338 = arith.addf %337, %318 : vector<8x128xf32>
    %339 = vector.broadcast %9 : vector<1x128xf32> to vector<8x128xf32>
    %340 = arith.addf %338, %339 : vector<8x128xf32>
    %341 = arith.negf %340 : vector<8x128xf32>
    %342 = math.exp %341 : vector<8x128xf32>
    %cst_63 = arith.constant 1.000000e+00 : f32
    %343 = vector.broadcast %cst_63 : f32 to vector<8x128xf32>
    %344 = arith.addf %343, %342 : vector<8x128xf32>
    %345 = arith.divf %343, %344 : vector<8x128xf32>
    %346 = vector.extract_strided_slice %345 {offsets = [0, 0], sizes = [8, 32], strides = [1, 1]} : vector<8x128xf32> to vector<8x32xf32>
    %347 = vector.extract_strided_slice %345 {offsets = [0, 32], sizes = [8, 32], strides = [1, 1]} : vector<8x128xf32> to vector<8x32xf32>
    %348 = vector.extract_strided_slice %345 {offsets = [0, 96], sizes = [8, 32], strides = [1, 1]} : vector<8x128xf32> to vector<8x32xf32>
    %349 = vector.extract_strided_slice %340 {offsets = [0, 64], sizes = [8, 32], strides = [1, 1]} : vector<8x128xf32> to vector<8x32xf32>
    %350 = math.tanh %349 : vector<8x32xf32>
    %351 = vector.extract_strided_slice %314 {offsets = [0, 32], sizes = [8, 32], strides = [1, 1]} : vector<8x64xf32> to vector<8x32xf32>
    %352 = arith.mulf %347, %351 : vector<8x32xf32>
    %353 = arith.mulf %346, %350 : vector<8x32xf32>
    %354 = arith.addf %352, %353 : vector<8x32xf32>
    %355 = math.tanh %354 : vector<8x32xf32>
    %356 = arith.mulf %348, %355 : vector<8x32xf32>
    %357 = tpu.concatenate %356, %354 in 1 : vector<8x32xf32>, vector<8x32xf32> -> vector<8x64xf32>
    %358 = vector.extract_strided_slice %357 {offsets = [0, 0], sizes = [8, 32], strides = [1, 1]} : vector<8x64xf32> to vector<8x32xf32>
    %359 = vector.broadcast %7 : vector<1x32xf32> to vector<8x32xf32>
    %360 = arith.mulf %358, %359 : vector<8x32xf32>
    %cst_64 = arith.constant dense<0.000000e+00> : vector<8xf32>
    %361 = vector.multi_reduction <add>, %360, %cst_64 [1] : vector<8x32xf32> to vector<8xf32>
    %362 = vector.shape_cast %361 : vector<8xf32> to vector<8x1xf32>
    %363 = arith.mulf %329, %15 : vector<8x8xf32>
    %cst_65 = arith.constant dense<0.000000e+00> : vector<8xf32>
    %364 = vector.multi_reduction <add>, %363, %cst_65 [1] : vector<8x8xf32> to vector<8xf32>
    %365 = vector.shape_cast %364 : vector<8xf32> to vector<8x1xf32>
    %366 = arith.addf %362, %365 : vector<8x1xf32>
    %367 = vector.broadcast %8 : vector<1x1xf32> to vector<8x1xf32>
    %368 = arith.addf %366, %367 : vector<8x1xf32>
    %369 = vector.shape_cast %368 : vector<8x1xf32> to vector<8x1xf32>
    %370 = vector.broadcast %369 : vector<8x1xf32> to vector<8x128xf32>
    %c0_66 = arith.constant 0 : index
    %c0_67 = arith.constant 0 : index
    %371 = vector.load %arg7[%c0_66, %c0_67] : memref<8x128xf32, #tpu.memory_space<vmem>>, vector<8x128xf32>
    tpu.vector_store %arg7[%c0_66, %c0_67], %370 {strides = array<i32>} : memref<8x128xf32, #tpu.memory_space<vmem>>, vector<8x128xf32>,
    return
  }
  func.func @transform_0(%arg0: i32) -> (i32, i32) {
    %c0_i32 = arith.constant 0 : i32
    %c0_i32_0 = arith.constant 0 : i32
    return %arg0, %c0_i32 : i32, i32
  }
  func.func @transform_1(%arg0: i32) -> (i32, i32) {
    %c0_i32 = arith.constant 0 : i32
    %c0_i32_0 = arith.constant 0 : i32
    return %arg0, %c0_i32 : i32, i32
  }
  func.func @transform_2(%arg0: i32) -> (i32, i32) {
    %c0_i32 = arith.constant 0 : i32
    %c0_i32_0 = arith.constant 0 : i32
    %c0_i32_1 = arith.constant 0 : i32
    return %c0_i32, %c0_i32_0 : i32, i32
  }
  func.func @transform_3(%arg0: i32) -> (i32, i32) {
    %c0_i32 = arith.constant 0 : i32
    %c0_i32_0 = arith.constant 0 : i32
    %c0_i32_1 = arith.constant 0 : i32
    return %c0_i32, %c0_i32_0 : i32, i32
  }
  func.func @transform_4(%arg0: i32) -> (i32, i32) {
    %c0_i32 = arith.constant 0 : i32
    %c0_i32_0 = arith.constant 0 : i32
    %c0_i32_1 = arith.constant 0 : i32
    return %c0_i32, %c0_i32_0 : i32, i32
  }
  func.func @transform_5(%arg0: i32) -> (i32, i32) {
    %c0_i32 = arith.constant 0 : i32
    %c0_i32_0 = arith.constant 0 : i32
    %c0_i32_1 = arith.constant 0 : i32
    return %c0_i32, %c0_i32_0 : i32, i32
  }
  func.func @transform_6(%arg0: i32) -> (i32, i32) {
    %c0_i32 = arith.constant 0 : i32
    %c0_i32_0 = arith.constant 0 : i32
    return %arg0, %c0_i32 : i32, i32
  }
}

</mosaic_0001>

<llo_original>
// kernel: tile.19
$region0: #{tile.19}
  %s0 = inlined_call_operand.vmem [shape: f32[8,32], index: 0, kind: input, shape index: {}]
  %s1 = inlined_call_operand.vmem [shape: f32[1,256], index: 1, kind: output, shape index: {}]
  $region1: #{tile.19} parent=0
    #allocation0 [shape = 'u8[8192]{0}', space=vmem, size = 0x2000, scoped, tag = 'scoped mem for output reshape']
    %s2 = smov 3
    %v3 = vld [vmem:[%s0] ss:$4 sm:%s2]
    %vm4 = vcmask 261120
    %5 = vst.msk [vmem:[#allocation0] ss:$8 sm:$0x3] %vm4, %v3
    %s6 = scalar_lea.vmem %s0, 3
    %s7 = smov 3
    %v8 = vld [vmem:[%s6] ss:$4 sm:%s7]
    %9 = vrot.lane.b32.xlu0 %v8, 96
    %v10 = vpop.permute.xlu0 %9
    %vm11 = vcmask 1048320
    %12 = vst.msk [vmem:[#allocation0] ss:$8 sm:$0x3] %vm11, %v10
    %s13 = scalar_lea.vmem %s0, 2
    %s14 = smov 3
    %v15 = vld [vmem:[%s13] ss:$4 sm:%s14]
    %16 = vrot.lane.b32.xlu0 %v15, 64
    %v17 = vpop.permute.xlu0 %16
    %vm18 = vcmask 785920
    %19 = vst.msk [vmem:[#allocation0] ss:$8 sm:$0x3] %vm18, %v17
    %s20 = scalar_lea.vmem %s0, 1
    %s21 = smov 3
    %v22 = vld [vmem:[%s20] ss:$4 sm:%s21]
    %23 = vrot.lane.b32.xlu0 %v22, 32
    %v24 = vpop.permute.xlu0 %23
    %vm25 = vcmask 523520
    %26 = vst.msk [vmem:[#allocation0] ss:$8 sm:$0x3] %vm25, %v24
    %s28 = ssub.s32 2, 1
    %v29 = vld [vmem:[#allocation0] sm:%s28]
    %s31 = ssub.s32 2, 1
    %32 = vst [vmem:[%s1] sm:%s31] %v29
    %s33 = scalar_lea.vmem [#allocation0], 8
    %v34 = vld [vmem:[%s33] sm:%s28]
    %s36 = ssub.s32 2, 1
    %s37 = scalar_lea.vmem %s1, 1
    %38 = vst [vmem:[%s37] sm:%s36] %v34

// kernel: decoder_rnn_pallas.1
$region0: #{decoder_rnn_pallas.1}
  #allocation0 [shape = 'u32[]', space=smem, size = 0x4, offset = 0x4, fixed_abs, tag = 'smem constant byte address 0x4 - core index']
  #allocation1 [shape = 'u32[72,128]{1,0:T(1,128)}', space=vmem, size = 0x9000, scoped, tag = 'internal scratch']
  %s0 = inlined_call_operand.vmem [shape: f32[8,256], index: 0, kind: input, shape index: {}]
  %s1 = inlined_call_operand.vmem [shape: f32[8,8], index: 1, kind: input, shape index: {}]
  %s2 = inlined_call_operand.vmem [shape: f32[256,272], index: 2, kind: input, shape index: {}]
  %s3 = inlined_call_operand.vmem [shape: f32[64,384], index: 3, kind: input, shape index: {}]
  %s4 = inlined_call_operand.vmem [shape: f32[256,8], index: 4, kind: input, shape index: {}]
  %s5 = inlined_call_operand.vmem [shape: f32[3,256], index: 5, kind: input, shape index: {}]
  %s6 = inlined_call_operand.vmem [shape: f32[8,128], index: 6, kind: output, shape index: {}]
  %s7 = sld [smem:[#allocation0]]
  $region34: #{decoder_rnn_pallas.1} parent=0
    _
  %s9 = ssub.s32 1, %s7
  %s10 = scalar_select 0, %s9, %s7
  // Predicated region
  $region2: #{decoder_rnn_pallas.1} parent=0 // pred_check
    _
  $region3: #{decoder_rnn_pallas.1} parent=0 // pred_check_branch
    %12 = sbr.rel (0) target = $region5
  $region4: #{decoder_rnn_pallas.1} parent=0 // pred_region
    _
  $region5: #{decoder_rnn_pallas.1} parent=0 // pred_fallthru
    _
  // Predicated region
  $region6: #{decoder_rnn_pallas.1} parent=0 // pred_check
    _
  $region7: #{decoder_rnn_pallas.1} parent=0 // pred_check_branch
    %14 = sbr.rel (0) target = $region9
  $region8: #{decoder_rnn_pallas.1} parent=0 // pred_region
    _
  $region9: #{decoder_rnn_pallas.1} parent=0 // pred_fallthru
    _
  // Predicated region
  $region10: #{decoder_rnn_pallas.1} parent=0 // pred_check
    _
  $region11: #{decoder_rnn_pallas.1} parent=0 // pred_check_branch
    %16 = sbr.rel (0) target = $region13
  $region12: #{decoder_rnn_pallas.1} parent=0 // pred_region
    _
  $region13: #{decoder_rnn_pallas.1} parent=0 // pred_fallthru
    _
  // Predicated region
  $region14: #{decoder_rnn_pallas.1} parent=0 // pred_check
    _
  $region15: #{decoder_rnn_pallas.1} parent=0 // pred_check_branch
    %18 = sbr.rel (0) target = $region17
  $region16: #{decoder_rnn_pallas.1} parent=0 // pred_region
    _
  $region17: #{decoder_rnn_pallas.1} parent=0 // pred_fallthru
    _
  // Predicated region
  $region18: #{decoder_rnn_pallas.1} parent=0 // pred_check
    _
  $region19: #{decoder_rnn_pallas.1} parent=0 // pred_check_branch
    %20 = sbr.rel (0) target = $region21
  $region20: #{decoder_rnn_pallas.1} parent=0 // pred_region
    _
  $region21: #{decoder_rnn_pallas.1} parent=0 // pred_fallthru
    _
  // Predicated region
  $region22: #{decoder_rnn_pallas.1} parent=0 // pred_check
    _
  $region23: #{decoder_rnn_pallas.1} parent=0 // pred_check_branch
    %22 = sbr.rel (0) target = $region25
  $region24: #{decoder_rnn_pallas.1} parent=0 // pred_region
    _
  $region25: #{decoder_rnn_pallas.1} parent=0 // pred_fallthru
    _
  %v23 = vld [vmem:[%s0] sm:$0xff]
  %v24 = vld [vmem:[%s0 + $0x8] sm:$0xff]
  %v25 = vld [vmem:[%s1] sm:$0xff]
  %v26 = vld [vmem:[%s2] sm:$0xff]
  %v27 = vld [vmem:[%s2 + $0x8] sm:$0xff]
  %v28 = vld [vmem:[%s2 + $0x10] sm:$0xff]
  %v29 = vld [vmem:[%s2 + $0x18] sm:$0xff]
  %v30 = vld [vmem:[%s2 + $0x20] sm:$0xff]
  %v31 = vld [vmem:[%s2 + $0x28] sm:$0xff]
  %v32 = vld [vmem:[%s2 + $0x30] sm:$0xff]
  %v33 = vld [vmem:[%s2 + $0x38] sm:$0xff]
  %v34 = vld [vmem:[%s2 + $0x40] sm:$0xff]
  %v35 = vld [vmem:[%s2 + $0x48] sm:$0xff]
  %v36 = vld [vmem:[%s2 + $0x50] sm:$0xff]
  %v37 = vld [vmem:[%s2 + $0x58] sm:$0xff]
  %v38 = vld [vmem:[%s2 + $0x60] sm:$0xff]
  %v39 = vld [vmem:[%s2 + $0x68] sm:$0xff]
  %v40 = vld [vmem:[%s2 + $0x70] sm:$0xff]
  %v41 = vld [vmem:[%s2 + $0x78] sm:$0xff]
  %v42 = vld [vmem:[%s2 + $0x80] sm:$0xff]
  %v43 = vld [vmem:[%s2 + $0x88] sm:$0xff]
  %v44 = vld [vmem:[%s2 + $0x90] sm:$0xff]
  %v45 = vld [vmem:[%s2 + $0x98] sm:$0xff]
  %v46 = vld [vmem:[%s2 + $0xa0] sm:$0xff]
  %v47 = vld [vmem:[%s2 + $0xa8] sm:$0xff]
  %v48 = vld [vmem:[%s2 + $0xb0] sm:$0xff]
  %v49 = vld [vmem:[%s2 + $0xb8] sm:$0xff]
  %v50 = vld [vmem:[%s2 + $0xc0] sm:$0xff]
  %v51 = vld [vmem:[%s2 + $0xc8] sm:$0xff]
  %v52 = vld [vmem:[%s2 + $0xd0] sm:$0xff]
  %v53 = vld [vmem:[%s2 + $0xd8] sm:$0xff]
  %v54 = vld [vmem:[%s2 + $0xe0] sm:$0xff]
  %v55 = vld [vmem:[%s2 + $0xe8] sm:$0xff]
  %v56 = vld [vmem:[%s2 + $0xf0] sm:$0xff]
  %v57 = vld [vmem:[%s2 + $0xf8] sm:$0xff]
  %v58 = vld [vmem:[%s2 + $0x100] sm:$0xff]
  %v59 = vld [vmem:[%s2 + $0x108] sm:$0xff]
  %v60 = vld [vmem:[%s2 + $0x110] sm:$0xff]
  %v61 = vld [vmem:[%s2 + $0x118] sm:$0xff]
  %v62 = vld [vmem:[%s2 + $0x120] sm:$0xff]
  %v63 = vld [vmem:[%s2 + $0x128] sm:$0xff]
  %v64 = vld [vmem:[%s2 + $0x130] sm:$0xff]
  %v65 = vld [vmem:[%s2 + $0x138] sm:$0xff]
  %v66 = vld [vmem:[%s2 + $0x140] sm:$0xff]
  %v67 = vld [vmem:[%s2 + $0x148] sm:$0xff]
  %v68 = vld [vmem:[%s2 + $0x150] sm:$0xff]
  %v69 = vld [vmem:[%s2 + $0x158] sm:$0xff]
  %v70 = vld [vmem:[%s2 + $0x160] sm:$0xff]
  %v71 = vld [vmem:[%s2 + $0x168] sm:$0xff]
  %v72 = vld [vmem:[%s2 + $0x170] sm:$0xff]
  %v73 = vld [vmem:[%s2 + $0x178] sm:$0xff]
  %v74 = vld [vmem:[%s2 + $0x180] sm:$0xff]
  %v75 = vld [vmem:[%s2 + $0x188] sm:$0xff]
  %v76 = vld [vmem:[%s2 + $0x190] sm:$0xff]
  %v77 = vld [vmem:[%s2 + $0x198] sm:$0xff]
  %v78 = vld [vmem:[%s2 + $0x1a0] sm:$0xff]
  %v79 = vld [vmem:[%s2 + $0x1a8] sm:$0xff]
  %v80 = vld [vmem:[%s2 + $0x1b0] sm:$0xff]
  %v81 = vld [vmem:[%s2 + $0x1b8] sm:$0xff]
  %v82 = vld [vmem:[%s2 + $0x1c0] sm:$0xff]
  %v83 = vld [vmem:[%s2 + $0x1c8] sm:$0xff]
  %v84 = vld [vmem:[%s2 + $0x1d0] sm:$0xff]
  %v85 = vld [vmem:[%s2 + $0x1d8] sm:$0xff]
  %v86 = vld [vmem:[%s2 + $0x1e0] sm:$0xff]
  %v87 = vld [vmem:[%s2 + $0x1e8] sm:$0xff]
  %v88 = vld [vmem:[%s2 + $0x1f0] sm:$0xff]
  %v89 = vld [vmem:[%s2 + $0x1f8] sm:$0xff]
  %v90 = vld [vmem:[%s2 + $0x200] sm:$0xff]
  %v91 = vld [vmem:[%s2 + $0x208] sm:$0xff]
  %v92 = vld [vmem:[%s2 + $0x210] sm:$0xff]
  %v93 = vld [vmem:[%s2 + $0x218] sm:$0xff]
  %v94 = vld [vmem:[%s2 + $0x220] sm:$0xff]
  %v95 = vld [vmem:[%s2 + $0x228] sm:$0xff]
  %v96 = vld [vmem:[%s2 + $0x230] sm:$0xff]
  %v97 = vld [vmem:[%s2 + $0x238] sm:$0xff]
  %v98 = vld [vmem:[%s2 + $0x240] sm:$0xff]
  %v99 = vld [vmem:[%s2 + $0x248] sm:$0xff]
  %v100 = vld [vmem:[%s2 + $0x250] sm:$0xff]
  %v101 = vld [vmem:[%s2 + $0x258] sm:$0xff]
  %v102 = vld [vmem:[%s2 + $0x260] sm:$0xff]
  %v103 = vld [vmem:[%s2 + $0x268] sm:$0xff]
  %v104 = vld [vmem:[%s2 + $0x270] sm:$0xff]
  %v105 = vld [vmem:[%s2 + $0x278] sm:$0xff]
  %v106 = vld [vmem:[%s2 + $0x280] sm:$0xff]
  %v107 = vld [vmem:[%s2 + $0x288] sm:$0xff]
  %v108 = vld [vmem:[%s2 + $0x290] sm:$0xff]
  %v109 = vld [vmem:[%s2 + $0x298] sm:$0xff]
  %v110 = vld [vmem:[%s2 + $0x2a0] sm:$0xff]
  %v111 = vld [vmem:[%s2 + $0x2a8] sm:$0xff]
  %v112 = vld [vmem:[%s2 + $0x2b0] sm:$0xff]
  %v113 = vld [vmem:[%s2 + $0x2b8] sm:$0xff]
  %v114 = vld [vmem:[%s2 + $0x2c0] sm:$0xff]
  %v115 = vld [vmem:[%s2 + $0x2c8] sm:$0xff]
  %v116 = vld [vmem:[%s2 + $0x2d0] sm:$0xff]
  %v117 = vld [vmem:[%s2 + $0x2d8] sm:$0xff]
  %v118 = vld [vmem:[%s2 + $0x2e0] sm:$0xff]
  %v119 = vld [vmem:[%s2 + $0x2e8] sm:$0xff]
  %v120 = vld [vmem:[%s2 + $0x2f0] sm:$0xff]
  %v121 = vld [vmem:[%s2 + $0x2f8] sm:$0xff]
  %v122 = vld [vmem:[%s3] sm:$0xff]
  %v123 = vld [vmem:[%s3 + $0x8] sm:$0xff]
  %v124 = vld [vmem:[%s3 + $0x10] sm:$0xff]
  %v125 = vld [vmem:[%s3 + $0x18] sm:$0xff]
  %v126 = vld [vmem:[%s3 + $0x20] sm:$0xff]
  %v127 = vld [vmem:[%s3 + $0x28] sm:$0xff]
  %v128 = vld [vmem:[%s3 + $0x30] sm:$0xff]
  %v129 = vld [vmem:[%s3 + $0x38] sm:$0xff]
  %v130 = vld [vmem:[%s3 + $0x40] sm:$0xff]
  %v131 = vld [vmem:[%s3 + $0x48] sm:$0xff]
  %v132 = vld [vmem:[%s3 + $0x50] sm:$0xff]
  %v133 = vld [vmem:[%s3 + $0x58] sm:$0xff]
  %v134 = vld [vmem:[%s3 + $0x60] sm:$0xff]
  %v135 = vld [vmem:[%s3 + $0x68] sm:$0xff]
  %v136 = vld [vmem:[%s3 + $0x70] sm:$0xff]
  %v137 = vld [vmem:[%s3 + $0x78] sm:$0xff]
  %v138 = vld [vmem:[%s3 + $0x80] sm:$0xff]
  %v139 = vld [vmem:[%s3 + $0x88] sm:$0xff]
  %v140 = vld [vmem:[%s3 + $0x90] sm:$0xff]
  %v141 = vld [vmem:[%s3 + $0x98] sm:$0xff]
  %v142 = vld [vmem:[%s3 + $0xa0] sm:$0xff]
  %v143 = vld [vmem:[%s3 + $0xa8] sm:$0xff]
  %v144 = vld [vmem:[%s3 + $0xb0] sm:$0xff]
  %v145 = vld [vmem:[%s3 + $0xb8] sm:$0xff]
  %v146 = vld [vmem:[%s4] sm:$0xff]
  %v147 = vld [vmem:[%s4 + $0x8] sm:$0xff]
  %v148 = vld [vmem:[%s4 + $0x10] sm:$0xff]
  %v149 = vld [vmem:[%s4 + $0x18] sm:$0xff]
  %v150 = vld [vmem:[%s4 + $0x20] sm:$0xff]
  %v151 = vld [vmem:[%s4 + $0x28] sm:$0xff]
  %v152 = vld [vmem:[%s4 + $0x30] sm:$0xff]
  %v153 = vld [vmem:[%s4 + $0x38] sm:$0xff]
  %v154 = vld [vmem:[%s4 + $0x40] sm:$0xff]
  %v155 = vld [vmem:[%s4 + $0x48] sm:$0xff]
  %v156 = vld [vmem:[%s4 + $0x50] sm:$0xff]
  %v157 = vld [vmem:[%s4 + $0x58] sm:$0xff]
  %v158 = vld [vmem:[%s4 + $0x60] sm:$0xff]
  %v159 = vld [vmem:[%s4 + $0x68] sm:$0xff]
  %v160 = vld [vmem:[%s4 + $0x70] sm:$0xff]
  %v161 = vld [vmem:[%s4 + $0x78] sm:$0xff]
  %v162 = vld [vmem:[%s4 + $0x80] sm:$0xff]
  %v163 = vld [vmem:[%s4 + $0x88] sm:$0xff]
  %v164 = vld [vmem:[%s4 + $0x90] sm:$0xff]
  %v165 = vld [vmem:[%s4 + $0x98] sm:$0xff]
  %v166 = vld [vmem:[%s4 + $0xa0] sm:$0xff]
  %v167 = vld [vmem:[%s4 + $0xa8] sm:$0xff]
  %v168 = vld [vmem:[%s4 + $0xb0] sm:$0xff]
  %v169 = vld [vmem:[%s4 + $0xb8] sm:$0xff]
  %v170 = vld [vmem:[%s4 + $0xc0] sm:$0xff]
  %v171 = vld [vmem:[%s4 + $0xc8] sm:$0xff]
  %v172 = vld [vmem:[%s4 + $0xd0] sm:$0xff]
  %v173 = vld [vmem:[%s4 + $0xd8] sm:$0xff]
  %v174 = vld [vmem:[%s4 + $0xe0] sm:$0xff]
  %v175 = vld [vmem:[%s4 + $0xe8] sm:$0xff]
  %v176 = vld [vmem:[%s4 + $0xf0] sm:$0xff]
  %v177 = vld [vmem:[%s4 + $0xf8] sm:$0xff]
  %v178 = vld [vmem:[%s5] ss:$4 sm:$0x3]
  %v179 = vld [vmem:[%s5 + $0x1] sm:$0x1]
  %v180 = vld [vmem:[%s5 + $0x5] sm:$0x1]
  %v181 = vld [vmem:[%s5 + $0x2] sm:$0x1]
  %182 = vmatpush.msra.mxu0 %v71
  %183 = vmatpush.msra.mxu0 %v68
  %184 = vmatpush.msra.mxu0 %v65
  %185 = vmatpush.msra.mxu0 %v62
  %186 = vmatpush.msra.mxu0 %v59
  %187 = vmatpush.msra.mxu0 %v56
  %188 = vmatpush.msra.mxu0 %v53
  %189 = vmatpush.msra.mxu0 %v50
  %190 = vmatpush.msra.mxu0 %v47
  %191 = vmatpush.msra.mxu0 %v44
  %192 = vmatpush.msra.mxu0 %v41
  %193 = vmatpush.msra.mxu0 %v38
  %194 = vmatpush.msra.mxu0 %v35
  %195 = vmatpush.msra.mxu0 %v32
  %196 = vmatpush.msra.mxu0 %v29
  %197 = vmatpush.msra.mxu0 %v26
  %198 = vmatmul.f32.gmra.mxu0 %v23
  %v199 = vpop.f32.mrf.mxu0
  %v200 = vadd.f32 0.0, %v199
  %201 = vdwg.mxu0
  %202 = vmatpush.msra.mxu0 %v119
  %203 = vmatpush.msra.mxu0 %v116
  %204 = vmatpush.msra.mxu0 %v113
  %205 = vmatpush.msra.mxu0 %v110
  %206 = vmatpush.msra.mxu0 %v107
  %207 = vmatpush.msra.mxu0 %v104
  %208 = vmatpush.msra.mxu0 %v101
  %209 = vmatpush.msra.mxu0 %v98
  %210 = vmatpush.msra.mxu0 %v95
  %211 = vmatpush.msra.mxu0 %v92
  %212 = vmatpush.msra.mxu0 %v89
  %213 = vmatpush.msra.mxu0 %v86
  %214 = vmatpush.msra.mxu0 %v83
  %215 = vmatpush.msra.mxu0 %v80
  %216 = vmatpush.msra.mxu0 %v77
  %217 = vmatpush.msra.mxu0 %v74
  %218 = vmatmul.f32.gmra.mxu0 %v24
  %v219 = vpop.f32.mrf.mxu0
  %v220 = vadd.f32 %v200, %v219
  %221 = vdwg.mxu0
  %222 = vmatpush.msra.mxu0 %v72
  %223 = vmatpush.msra.mxu0 %v69
  %224 = vmatpush.msra.mxu0 %v66
  %225 = vmatpush.msra.mxu0 %v63
  %226 = vmatpush.msra.mxu0 %v60
  %227 = vmatpush.msra.mxu0 %v57
  %228 = vmatpush.msra.mxu0 %v54
  %229 = vmatpush.msra.mxu0 %v51
  %230 = vmatpush.msra.mxu0 %v48
  %231 = vmatpush.msra.mxu0 %v45
  %232 = vmatpush.msra.mxu0 %v42
  %233 = vmatpush.msra.mxu0 %v39
  %234 = vmatpush.msra.mxu0 %v36
  %235 = vmatpush.msra.mxu0 %v33
  %236 = vmatpush.msra.mxu0 %v30
  %237 = vmatpush.msra.mxu0 %v27
  %238 = vmatmul.f32.gmra.mxu0 %v23
  %v239 = vpop.f32.mrf.mxu0
  %v240 = vadd.f32 0.0, %v239
  %241 = vdwg.mxu0
  %242 = vmatpush.msra.mxu0 %v120
  %243 = vmatpush.msra.mxu0 %v117
  %244 = vmatpush.msra.mxu0 %v114
  %245 = vmatpush.msra.mxu0 %v111
  %246 = vmatpush.msra.mxu0 %v108
  %247 = vmatpush.msra.mxu0 %v105
  %248 = vmatpush.msra.mxu0 %v102
  %249 = vmatpush.msra.mxu0 %v99
  %250 = vmatpush.msra.mxu0 %v96
  %251 = vmatpush.msra.mxu0 %v93
  %252 = vmatpush.msra.mxu0 %v90
  %253 = vmatpush.msra.mxu0 %v87
  %254 = vmatpush.msra.mxu0 %v84
  %255 = vmatpush.msra.mxu0 %v81
  %256 = vmatpush.msra.mxu0 %v78
  %257 = vmatpush.msra.mxu0 %v75
  %258 = vmatmul.f32.gmra.mxu0 %v24
  %v259 = vpop.f32.mrf.mxu0
  %v260 = vadd.f32 %v240, %v259
  %261 = vdwg.mxu0
  %262 = vmatpush.msra.mxu0 %v73
  %263 = vmatpush.msra.mxu0 %v70
  %264 = vmatpush.msra.mxu0 %v67
  %265 = vmatpush.msra.mxu0 %v64
  %266 = vmatpush.msra.mxu0 %v61
  %267 = vmatpush.msra.mxu0 %v58
  %268 = vmatpush.msra.mxu0 %v55
  %269 = vmatpush.msra.mxu0 %v52
  %270 = vmatpush.msra.mxu0 %v49
  %271 = vmatpush.msra.mxu0 %v46
  %272 = vmatpush.msra.mxu0 %v43
  %273 = vmatpush.msra.mxu0 %v40
  %274 = vmatpush.msra.mxu0 %v37
  %275 = vmatpush.msra.mxu0 %v34
  %276 = vmatpush.msra.mxu0 %v31
  %277 = vmatpush.msra.mxu0 %v28
  %278 = vmatmul.f32.gmra.mxu0 %v23
  %v279 = vpop.f32.mrf.mxu0
  %v280 = vadd.f32 0.0, %v279
  %281 = vdwg.mxu0
  %282 = vmatpush.msra.mxu0 %v121
  %283 = vmatpush.msra.mxu0 %v118
  %284 = vmatpush.msra.mxu0 %v115
  %285 = vmatpush.msra.mxu0 %v112
  %286 = vmatpush.msra.mxu0 %v109
  %287 = vmatpush.msra.mxu0 %v106
  %288 = vmatpush.msra.mxu0 %v103
  %289 = vmatpush.msra.mxu0 %v100
  %290 = vmatpush.msra.mxu0 %v97
  %291 = vmatpush.msra.mxu0 %v94
  %292 = vmatpush.msra.mxu0 %v91
  %293 = vmatpush.msra.mxu0 %v88
  %294 = vmatpush.msra.mxu0 %v85
  %295 = vmatpush.msra.mxu0 %v82
  %296 = vmatpush.msra.mxu0 %v79
  %297 = vmatpush.msra.mxu0 %v76
  %298 = vmatmul.f32.gmra.mxu0 %v24
  %v299 = vpop.f32.mrf.mxu0
  %v300 = vadd.f32 %v280, %v299
  %301 = vdwg.mxu0
  %v303 = vperm.slane %v178, 0
  %v304 = vperm.slane %v178, 1
  %v307 = vadd.f32 %v220, %v303
  %v308 = vadd.f32 %v260, %v304
  %v309 = vtanh.pop %v307
  %v310 = vtanh.pop %v308
  %311 = vmatpush.msra.mxu0 %v161
  %312 = vmatpush.msra.mxu0 %v160
  %313 = vmatpush.msra.mxu0 %v159
  %314 = vmatpush.msra.mxu0 %v158
  %315 = vmatpush.msra.mxu0 %v157
  %316 = vmatpush.msra.mxu0 %v156
  %317 = vmatpush.msra.mxu0 %v155
  %318 = vmatpush.msra.mxu0 %v154
  %319 = vmatpush.msra.mxu0 %v153
  %320 = vmatpush.msra.mxu0 %v152
  %321 = vmatpush.msra.mxu0 %v151
  %322 = vmatpush.msra.mxu0 %v150
  %323 = vmatpush.msra.mxu0 %v149
  %324 = vmatpush.msra.mxu0 %v148
  %325 = vmatpush.msra.mxu0 %v147
  %326 = vmatpush.msra.mxu0 %v146
  %327 = vmatmul.f32.gmra.mxu0 %v309
  %v328 = vpop.f32.mrf.mxu0
  %v329 = vadd.f32 0.0, %v328
  %330 = vdwg.mxu0
  %331 = vmatpush.msra.mxu0 %v177
  %332 = vmatpush.msra.mxu0 %v176
  %333 = vmatpush.msra.mxu0 %v175
  %334 = vmatpush.msra.mxu0 %v174
  %335 = vmatpush.msra.mxu0 %v173
  %336 = vmatpush.msra.mxu0 %v172
  %337 = vmatpush.msra.mxu0 %v171
  %338 = vmatpush.msra.mxu0 %v170
  %339 = vmatpush.msra.mxu0 %v169
  %340 = vmatpush.msra.mxu0 %v168
  %341 = vmatpush.msra.mxu0 %v167
  %342 = vmatpush.msra.mxu0 %v166
  %343 = vmatpush.msra.mxu0 %v165
  %344 = vmatpush.msra.mxu0 %v164
  %345 = vmatpush.msra.mxu0 %v163
  %346 = vmatpush.msra.mxu0 %v162
  %347 = vmatmul.f32.gmra.mxu0 %v310
  %v348 = vpop.f32.mrf.mxu0
  %v349 = vadd.f32 %v329, %v348
  %350 = vdwg.mxu0
  %vm351 = vcmask 64512
  %v352 = vsel %vm351, %v349, -inf
  %353 = vmax.xlane.f32.xlu0 %v352
  %v354 = vpop.xlane.xlu0 %353
  %v355 = vsub.f32 %v349, %v354
  %v356 = vmul.f32 %v355, 1.442695
  %v357 = vpow.pop %v356
  %v358 = vsel %vm351, %v357, 0.0
  %359 = vadd.xlane.f32.xlu0 %v358
  %v360 = vpop.xlane.xlu0 %359
  %v361 = vrcp.pop %v360
  %v362 = vmul.f32 %v360, %v361
  %v363 = vsub.f32 1.0, %v362
  %v364 = vmul.f32 %v361, %v363
  %v365 = vadd.f32 %v361, %v364
  %vm366 = vweird.f32 %v360
  %vm367 = vweird.f32 %v361
  %vm368 = vmor %vm366, %vm367
  %v369 = vsel %vm368, %v361, %v365
  %v370 = vand.u32 2147483647, %v360
  %vm371 = vcmp.eq.f32.partialorder %v370, 8.507059e+37
  %v372 = vand.u32 %v360, 2147483648
  %v373 = vor.u32 1.1754944e-38, %v372
  %v374 = vsel %vm371, %v373, %v369
  %v375 = vmul.f32 %v357, %v374
  %v376 = vmul.f32 %v375, %v300
  %v377 = vsel %vm351, %v376, 0.0
  %378 = vadd.xlane.f32.xlu0 %v377
  %v379 = vpop.xlane.xlu0 %378
  %v380 = vadd.f32 %v379, %v25
  %382 = vset.pattern.permute.xlu0 0
  %383 = vperm.xlu0 %382, %v380
  %v384 = vpop.permute.xlu0 %383
  %v386 = vperm.slane %v179, 0
  %v387 = vmul.f32 %v384, %v386
  %v388 = vadd.f32 %v387, 0.0
  %v389 = vperm.slane %v181, 0
  %v390 = vadd.f32 %v388, %v389
  %v391 = vxor.u32 %v390, 2147483648
  %v392 = vmul.f32 %v391, 1.442695
  %v393 = vpow.pop %v392
  %v394 = vadd.f32 %v393, 1.0
  %v395 = vrcp.pop %v394
  %v396 = vmul.f32 %v394, %v395
  %v397 = vsub.f32 1.0, %v396
  %v398 = vmul.f32 %v395, %v397
  %v399 = vadd.f32 %v395, %v398
  %vm400 = vweird.f32 %v394
  %vm401 = vweird.f32 %v395
  %vm402 = vmor %vm400, %vm401
  %v403 = vsel %vm402, %v395, %v399
  %v404 = vand.u32 2147483647, %v394
  %vm405 = vcmp.eq.f32.partialorder %v404, 8.507059e+37
  %v406 = vand.u32 %v394, 2147483648
  %v407 = vor.u32 1.1754944e-38, %v406
  %v408 = vsel %vm405, %v407, %v403
  %v409 = vmul.f32 1.0, %v408
  %v410 = vtanh.pop %v390
  %v411 = vmul.f32 %v409, 0.0
  %413 = vrot.lane.b32.xlu0 %v410, 64
  %v414 = vpop.permute.xlu0 %413
  %v416 = vmul.f32 %v409, %v414
  %418 = vrot.lane.b32.xlu0 %v416, 32
  %v419 = vpop.permute.xlu0 %418
  %v421 = vadd.f32 %v411, %v419
  %v422 = vtanh.pop %v421
  %424 = vrot.lane.b32.xlu0 %v422, 64
  %v425 = vpop.permute.xlu0 %424
  %v427 = vmul.f32 %v409, %v425
  %429 = vrot.lane.b32.xlu0 %v427, 32
  %v430 = vpop.permute.xlu0 %429
  %vm432 = vcmask 261120
  %v433 = vsel %vm432, %v430, %v421
  %vm434 = vcmask 523264
  %v436 = vsel %vm434, %v433, 0
  %438 = vmatpush.msra.mxu0 0.0
  %439 = vmatpush.msra.mxu0 0.0
  %440 = vmatpush.msra.mxu0 0.0
  %441 = vmatpush.msra.mxu0 0.0
  %442 = vmatpush.msra.mxu0 0.0
  %443 = vmatpush.msra.mxu0 0.0
  %444 = vmatpush.msra.mxu0 0.0
  %445 = vmatpush.msra.mxu0 0.0
  %446 = vmatpush.msra.mxu0 %v143
  %447 = vmatpush.msra.mxu0 %v140
  %448 = vmatpush.msra.mxu0 %v137
  %449 = vmatpush.msra.mxu0 %v134
  %450 = vmatpush.msra.mxu0 %v131
  %451 = vmatpush.msra.mxu0 %v128
  %452 = vmatpush.msra.mxu0 %v125
  %453 = vmatpush.msra.mxu0 %v122
  %454 = vmatmul.f32.gmra.mxu0 %v436
  %v455 = vpop.f32.mrf.mxu0
  %v456 = vadd.f32 0.0, %v455
  %457 = vdwg.mxu0
  %458 = vmatpush.msra.mxu0 0.0
  %459 = vmatpush.msra.mxu0 0.0
  %460 = vmatpush.msra.mxu0 0.0
  %461 = vmatpush.msra.mxu0 0.0
  %462 = vmatpush.msra.mxu0 0.0
  %463 = vmatpush.msra.mxu0 0.0
  %464 = vmatpush.msra.mxu0 0.0
  %465 = vmatpush.msra.mxu0 0.0
  %466 = vmatpush.msra.mxu0 %v144
  %467 = vmatpush.msra.mxu0 %v141
  %468 = vmatpush.msra.mxu0 %v138
  %469 = vmatpush.msra.mxu0 %v135
  %470 = vmatpush.msra.mxu0 %v132
  %471 = vmatpush.msra.mxu0 %v129
  %472 = vmatpush.msra.mxu0 %v126
  %473 = vmatpush.msra.mxu0 %v123
  %474 = vmatmul.f32.gmra.mxu0 %v436
  %v475 = vpop.f32.mrf.mxu0
  %v476 = vadd.f32 0.0, %v475
  %477 = vdwg.mxu0
  %478 = vmatpush.msra.mxu0 0.0
  %479 = vmatpush.msra.mxu0 0.0
  %480 = vmatpush.msra.mxu0 0.0
  %481 = vmatpush.msra.mxu0 0.0
  %482 = vmatpush.msra.mxu0 0.0
  %483 = vmatpush.msra.mxu0 0.0
  %484 = vmatpush.msra.mxu0 0.0
  %485 = vmatpush.msra.mxu0 0.0
  %486 = vmatpush.msra.mxu0 %v145
  %487 = vmatpush.msra.mxu0 %v142
  %488 = vmatpush.msra.mxu0 %v139
  %489 = vmatpush.msra.mxu0 %v136
  %490 = vmatpush.msra.mxu0 %v133
  %491 = vmatpush.msra.mxu0 %v130
  %492 = vmatpush.msra.mxu0 %v127
  %493 = vmatpush.msra.mxu0 %v124
  %494 = vmatmul.f32.gmra.mxu0 %v436
  %v495 = vpop.f32.mrf.mxu0
  %v496 = vadd.f32 0.0, %v495
  %497 = vdwg.mxu0
  %v498 = vadd.f32 %v456, %v307
  %v499 = vadd.f32 %v476, %v308
  %v500 = vtanh.pop %v498
  %v501 = vtanh.pop %v499
  %502 = vmatpush.msra.mxu0 %v161
  %503 = vmatpush.msra.mxu0 %v160
  %504 = vmatpush.msra.mxu0 %v159
  %505 = vmatpush.msra.mxu0 %v158
  %506 = vmatpush.msra.mxu0 %v157
  %507 = vmatpush.msra.mxu0 %v156
  %508 = vmatpush.msra.mxu0 %v155
  %509 = vmatpush.msra.mxu0 %v154
  %510 = vmatpush.msra.mxu0 %v153
  %511 = vmatpush.msra.mxu0 %v152
  %512 = vmatpush.msra.mxu0 %v151
  %513 = vmatpush.msra.mxu0 %v150
  %514 = vmatpush.msra.mxu0 %v149
  %515 = vmatpush.msra.mxu0 %v148
  %516 = vmatpush.msra.mxu0 %v147
  %517 = vmatpush.msra.mxu0 %v146
  %518 = vmatmul.f32.gmra.mxu0 %v500
  %v519 = vpop.f32.mrf.mxu0
  %v520 = vadd.f32 0.0, %v519
  %521 = vdwg.mxu0
  %522 = vmatpush.msra.mxu0 %v177
  %523 = vmatpush.msra.mxu0 %v176
  %524 = vmatpush.msra.mxu0 %v175
  %525 = vmatpush.msra.mxu0 %v174
  %526 = vmatpush.msra.mxu0 %v173
  %527 = vmatpush.msra.mxu0 %v172
  %528 = vmatpush.msra.mxu0 %v171
  %529 = vmatpush.msra.mxu0 %v170
  %530 = vmatpush.msra.mxu0 %v169
  %531 = vmatpush.msra.mxu0 %v168
  %532 = vmatpush.msra.mxu0 %v167
  %533 = vmatpush.msra.mxu0 %v166
  %534 = vmatpush.msra.mxu0 %v165
  %535 = vmatpush.msra.mxu0 %v164
  %536 = vmatpush.msra.mxu0 %v163
  %537 = vmatpush.msra.mxu0 %v162
  %538 = vmatmul.f32.gmra.mxu0 %v501
  %v539 = vpop.f32.mrf.mxu0
  %v540 = vadd.f32 %v520, %v539
  %541 = vdwg.mxu0
  %v542 = vsel %vm351, %v540, -inf
  %543 = vmax.xlane.f32.xlu0 %v542
  %v544 = vpop.xlane.xlu0 %543
  %v545 = vsub.f32 %v540, %v544
  %v546 = vmul.f32 %v545, 1.442695
  %v547 = vpow.pop %v546
  %v548 = vsel %vm351, %v547, 0.0
  %549 = vadd.xlane.f32.xlu0 %v548
  %v550 = vpop.xlane.xlu0 %549
  %v551 = vrcp.pop %v550
  %v552 = vmul.f32 %v550, %v551
  %v553 = vsub.f32 1.0, %v552
  %v554 = vmul.f32 %v551, %v553
  %v555 = vadd.f32 %v551, %v554
  %vm556 = vweird.f32 %v550
  %vm557 = vweird.f32 %v551
  %vm558 = vmor %vm556, %vm557
  %v559 = vsel %vm558, %v551, %v555
  %v560 = vand.u32 2147483647, %v550
  %vm561 = vcmp.eq.f32.partialorder %v560, 8.507059e+37
  %v562 = vand.u32 %v550, 2147483648
  %v563 = vor.u32 1.1754944e-38, %v562
  %v564 = vsel %vm561, %v563, %v559
  %v565 = vmul.f32 %v547, %v564
  %v566 = vmul.f32 %v565, %v300
  %v567 = vsel %vm351, %v566, 0.0
  %568 = vadd.xlane.f32.xlu0 %v567
  %v569 = vpop.xlane.xlu0 %568
  %v570 = vadd.f32 %v569, %v25
  %572 = vset.pattern.permute.xlu0 1
  %573 = vperm.xlu0 %572, %v570
  %v574 = vpop.permute.xlu0 %573
  %v576 = vmul.f32 %v574, %v386
  %v577 = vadd.f32 %v576, %v496
  %v578 = vadd.f32 %v577, %v389
  %v579 = vxor.u32 %v578, 2147483648
  %v580 = vmul.f32 %v579, 1.442695
  %v581 = vpow.pop %v580
  %v582 = vadd.f32 %v581, 1.0
  %v583 = vrcp.pop %v582
  %v584 = vmul.f32 %v582, %v583
  %v585 = vsub.f32 1.0, %v584
  %v586 = vmul.f32 %v583, %v585
  %v587 = vadd.f32 %v583, %v586
  %vm588 = vweird.f32 %v582
  %vm589 = vweird.f32 %v583
  %vm590 = vmor %vm588, %vm589
  %v591 = vsel %vm590, %v583, %v587
  %v592 = vand.u32 2147483647, %v582
  %vm593 = vcmp.eq.f32.partialorder %v592, 8.507059e+37
  %v594 = vand.u32 %v582, 2147483648
  %v595 = vor.u32 1.1754944e-38, %v594
  %v596 = vsel %vm593, %v595, %v591
  %v597 = vmul.f32 1.0, %v596
  %v598 = vtanh.pop %v578
  %v599 = vmul.f32 %v597, %v433
  %601 = vrot.lane.b32.xlu0 %v598, 64
  %v602 = vpop.permute.xlu0 %601
  %v604 = vmul.f32 %v597, %v602
  %606 = vrot.lane.b32.xlu0 %v604, 32
  %v607 = vpop.permute.xlu0 %606
  %v609 = vadd.f32 %v599, %v607
  %v610 = vtanh.pop %v609
  %612 = vrot.lane.b32.xlu0 %v610, 64
  %v613 = vpop.permute.xlu0 %612
  %v615 = vmul.f32 %v597, %v613
  %617 = vrot.lane.b32.xlu0 %v615, 32
  %v618 = vpop.permute.xlu0 %617
  %v620 = vsel %vm432, %v618, %v609
  %v622 = vsel %vm434, %v620, 0
  %624 = vmatpush.msra.mxu0 0.0
  %625 = vmatpush.msra.mxu0 0.0
  %626 = vmatpush.msra.mxu0 0.0
  %627 = vmatpush.msra.mxu0 0.0
  %628 = vmatpush.msra.mxu0 0.0
  %629 = vmatpush.msra.mxu0 0.0
  %630 = vmatpush.msra.mxu0 0.0
  %631 = vmatpush.msra.mxu0 0.0
  %632 = vmatpush.msra.mxu0 %v143
  %633 = vmatpush.msra.mxu0 %v140
  %634 = vmatpush.msra.mxu0 %v137
  %635 = vmatpush.msra.mxu0 %v134
  %636 = vmatpush.msra.mxu0 %v131
  %637 = vmatpush.msra.mxu0 %v128
  %638 = vmatpush.msra.mxu0 %v125
  %639 = vmatpush.msra.mxu0 %v122
  %640 = vmatmul.f32.gmra.mxu0 %v622
  %v641 = vpop.f32.mrf.mxu0
  %v642 = vadd.f32 0.0, %v641
  %643 = vdwg.mxu0
  %644 = vmatpush.msra.mxu0 0.0
  %645 = vmatpush.msra.mxu0 0.0
  %646 = vmatpush.msra.mxu0 0.0
  %647 = vmatpush.msra.mxu0 0.0
  %648 = vmatpush.msra.mxu0 0.0
  %649 = vmatpush.msra.mxu0 0.0
  %650 = vmatpush.msra.mxu0 0.0
  %651 = vmatpush.msra.mxu0 0.0
  %652 = vmatpush.msra.mxu0 %v144
  %653 = vmatpush.msra.mxu0 %v141
  %654 = vmatpush.msra.mxu0 %v138
  %655 = vmatpush.msra.mxu0 %v135
  %656 = vmatpush.msra.mxu0 %v132
  %657 = vmatpush.msra.mxu0 %v129
  %658 = vmatpush.msra.mxu0 %v126
  %659 = vmatpush.msra.mxu0 %v123
  %660 = vmatmul.f32.gmra.mxu0 %v622
  %v661 = vpop.f32.mrf.mxu0
  %v662 = vadd.f32 0.0, %v661
  %663 = vdwg.mxu0
  %664 = vmatpush.msra.mxu0 0.0
  %665 = vmatpush.msra.mxu0 0.0
  %666 = vmatpush.msra.mxu0 0.0
  %667 = vmatpush.msra.mxu0 0.0
  %668 = vmatpush.msra.mxu0 0.0
  %669 = vmatpush.msra.mxu0 0.0
  %670 = vmatpush.msra.mxu0 0.0
  %671 = vmatpush.msra.mxu0 0.0
  %672 = vmatpush.msra.mxu0 %v145
  %673 = vmatpush.msra.mxu0 %v142
  %674 = vmatpush.msra.mxu0 %v139
  %675 = vmatpush.msra.mxu0 %v136
  %676 = vmatpush.msra.mxu0 %v133
  %677 = vmatpush.msra.mxu0 %v130
  %678 = vmatpush.msra.mxu0 %v127
  %679 = vmatpush.msra.mxu0 %v124
  %680 = vmatmul.f32.gmra.mxu0 %v622
  %v681 = vpop.f32.mrf.mxu0
  %v682 = vadd.f32 0.0, %v681
  %683 = vdwg.mxu0
  %v684 = vadd.f32 %v642, %v307
  %v685 = vadd.f32 %v662, %v308
  %v686 = vtanh.pop %v684
  %v687 = vtanh.pop %v685
  %688 = vmatpush.msra.mxu0 %v161
  %689 = vmatpush.msra.mxu0 %v160
  %690 = vmatpush.msra.mxu0 %v159
  %691 = vmatpush.msra.mxu0 %v158
  %692 = vmatpush.msra.mxu0 %v157
  %693 = vmatpush.msra.mxu0 %v156
  %694 = vmatpush.msra.mxu0 %v155
  %695 = vmatpush.msra.mxu0 %v154
  %696 = vmatpush.msra.mxu0 %v153
  %697 = vmatpush.msra.mxu0 %v152
  %698 = vmatpush.msra.mxu0 %v151
  %699 = vmatpush.msra.mxu0 %v150
  %700 = vmatpush.msra.mxu0 %v149
  %701 = vmatpush.msra.mxu0 %v148
  %702 = vmatpush.msra.mxu0 %v147
  %703 = vmatpush.msra.mxu0 %v146
  %704 = vmatmul.f32.gmra.mxu0 %v686
  %v705 = vpop.f32.mrf.mxu0
  %v706 = vadd.f32 0.0, %v705
  %707 = vdwg.mxu0
  %708 = vmatpush.msra.mxu0 %v177
  %709 = vmatpush.msra.mxu0 %v176
  %710 = vmatpush.msra.mxu0 %v175
  %711 = vmatpush.msra.mxu0 %v174
  %712 = vmatpush.msra.mxu0 %v173
  %713 = vmatpush.msra.mxu0 %v172
  %714 = vmatpush.msra.mxu0 %v171
  %715 = vmatpush.msra.mxu0 %v170
  %716 = vmatpush.msra.mxu0 %v169
  %717 = vmatpush.msra.mxu0 %v168
  %718 = vmatpush.msra.mxu0 %v167
  %719 = vmatpush.msra.mxu0 %v166
  %720 = vmatpush.msra.mxu0 %v165
  %721 = vmatpush.msra.mxu0 %v164
  %722 = vmatpush.msra.mxu0 %v163
  %723 = vmatpush.msra.mxu0 %v162
  %724 = vmatmul.f32.gmra.mxu0 %v687
  %v725 = vpop.f32.mrf.mxu0
  %v726 = vadd.f32 %v706, %v725
  %727 = vdwg.mxu0
  %v728 = vsel %vm351, %v726, -inf
  %729 = vmax.xlane.f32.xlu0 %v728
  %v730 = vpop.xlane.xlu0 %729
  %v731 = vsub.f32 %v726, %v730
  %v732 = vmul.f32 %v731, 1.442695
  %v733 = vpow.pop %v732
  %v734 = vsel %vm351, %v733, 0.0
  %735 = vadd.xlane.f32.xlu0 %v734
  %v736 = vpop.xlane.xlu0 %735
  %v737 = vrcp.pop %v736
  %v738 = vmul.f32 %v736, %v737
  %v739 = vsub.f32 1.0, %v738
  %v740 = vmul.f32 %v737, %v739
  %v741 = vadd.f32 %v737, %v740
  %vm742 = vweird.f32 %v736
  %vm743 = vweird.f32 %v737
  %vm744 = vmor %vm742, %vm743
  %v745 = vsel %vm744, %v737, %v741
  %v746 = vand.u32 2147483647, %v736
  %vm747 = vcmp.eq.f32.partialorder %v746, 8.507059e+37
  %v748 = vand.u32 %v736, 2147483648
  %v749 = vor.u32 1.1754944e-38, %v748
  %v750 = vsel %vm747, %v749, %v745
  %v751 = vmul.f32 %v733, %v750
  %v752 = vmul.f32 %v751, %v300
  %v753 = vsel %vm351, %v752, 0.0
  %754 = vadd.xlane.f32.xlu0 %v753
  %v755 = vpop.xlane.xlu0 %754
  %v756 = vadd.f32 %v755, %v25
  %758 = vset.pattern.permute.xlu0 2
  %759 = vperm.xlu0 %758, %v756
  %v760 = vpop.permute.xlu0 %759
  %v762 = vmul.f32 %v760, %v386
  %v763 = vadd.f32 %v762, %v682
  %v764 = vadd.f32 %v763, %v389
  %v765 = vxor.u32 %v764, 2147483648
  %v766 = vmul.f32 %v765, 1.442695
  %v767 = vpow.pop %v766
  %v768 = vadd.f32 %v767, 1.0
  %v769 = vrcp.pop %v768
  %v770 = vmul.f32 %v768, %v769
  %v771 = vsub.f32 1.0, %v770
  %v772 = vmul.f32 %v769, %v771
  %v773 = vadd.f32 %v769, %v772
  %vm774 = vweird.f32 %v768
  %vm775 = vweird.f32 %v769
  %vm776 = vmor %vm774, %vm775
  %v777 = vsel %vm776, %v769, %v773
  %v778 = vand.u32 2147483647, %v768
  %vm779 = vcmp.eq.f32.partialorder %v778, 8.507059e+37
  %v780 = vand.u32 %v768, 2147483648
  %v781 = vor.u32 1.1754944e-38, %v780
  %v782 = vsel %vm779, %v781, %v777
  %v783 = vmul.f32 1.0, %v782
  %v784 = vtanh.pop %v764
  %v785 = vmul.f32 %v783, %v620
  %787 = vrot.lane.b32.xlu0 %v784, 64
  %v788 = vpop.permute.xlu0 %787
  %v790 = vmul.f32 %v783, %v788
  %792 = vrot.lane.b32.xlu0 %v790, 32
  %v793 = vpop.permute.xlu0 %792
  %v795 = vadd.f32 %v785, %v793
  %v796 = vtanh.pop %v795
  %798 = vrot.lane.b32.xlu0 %v796, 64
  %v799 = vpop.permute.xlu0 %798
  %v801 = vmul.f32 %v783, %v799
  %803 = vrot.lane.b32.xlu0 %v801, 32
  %v804 = vpop.permute.xlu0 %803
  %v806 = vsel %vm432, %v804, %v795
  %v808 = vsel %vm434, %v806, 0
  %810 = vmatpush.msra.mxu0 0.0
  %811 = vmatpush.msra.mxu0 0.0
  %812 = vmatpush.msra.mxu0 0.0
  %813 = vmatpush.msra.mxu0 0.0
  %814 = vmatpush.msra.mxu0 0.0
  %815 = vmatpush.msra.mxu0 0.0
  %816 = vmatpush.msra.mxu0 0.0
  %817 = vmatpush.msra.mxu0 0.0
  %818 = vmatpush.msra.mxu0 %v143
  %819 = vmatpush.msra.mxu0 %v140
  %820 = vmatpush.msra.mxu0 %v137
  %821 = vmatpush.msra.mxu0 %v134
  %822 = vmatpush.msra.mxu0 %v131
  %823 = vmatpush.msra.mxu0 %v128
  %824 = vmatpush.msra.mxu0 %v125
  %825 = vmatpush.msra.mxu0 %v122
  %826 = vmatmul.f32.gmra.mxu0 %v808
  %v827 = vpop.f32.mrf.mxu0
  %v828 = vadd.f32 0.0, %v827
  %829 = vdwg.mxu0
  %830 = vmatpush.msra.mxu0 0.0
  %831 = vmatpush.msra.mxu0 0.0
  %832 = vmatpush.msra.mxu0 0.0
  %833 = vmatpush.msra.mxu0 0.0
  %834 = vmatpush.msra.mxu0 0.0
  %835 = vmatpush.msra.mxu0 0.0
  %836 = vmatpush.msra.mxu0 0.0
  %837 = vmatpush.msra.mxu0 0.0
  %838 = vmatpush.msra.mxu0 %v144
  %839 = vmatpush.msra.mxu0 %v141
  %840 = vmatpush.msra.mxu0 %v138
  %841 = vmatpush.msra.mxu0 %v135
  %842 = vmatpush.msra.mxu0 %v132
  %843 = vmatpush.msra.mxu0 %v129
  %844 = vmatpush.msra.mxu0 %v126
  %845 = vmatpush.msra.mxu0 %v123
  %846 = vmatmul.f32.gmra.mxu0 %v808
  %v847 = vpop.f32.mrf.mxu0
  %v848 = vadd.f32 0.0, %v847
  %849 = vdwg.mxu0
  %850 = vmatpush.msra.mxu0 0.0
  %851 = vmatpush.msra.mxu0 0.0
  %852 = vmatpush.msra.mxu0 0.0
  %853 = vmatpush.msra.mxu0 0.0
  %854 = vmatpush.msra.mxu0 0.0
  %855 = vmatpush.msra.mxu0 0.0
  %856 = vmatpush.msra.mxu0 0.0
  %857 = vmatpush.msra.mxu0 0.0
  %858 = vmatpush.msra.mxu0 %v145
  %859 = vmatpush.msra.mxu0 %v142
  %860 = vmatpush.msra.mxu0 %v139
  %861 = vmatpush.msra.mxu0 %v136
  %862 = vmatpush.msra.mxu0 %v133
  %863 = vmatpush.msra.mxu0 %v130
  %864 = vmatpush.msra.mxu0 %v127
  %865 = vmatpush.msra.mxu0 %v124
  %866 = vmatmul.f32.gmra.mxu0 %v808
  %v867 = vpop.f32.mrf.mxu0
  %v868 = vadd.f32 0.0, %v867
  %869 = vdwg.mxu0
  %v870 = vadd.f32 %v828, %v307
  %v871 = vadd.f32 %v848, %v308
  %v872 = vtanh.pop %v870
  %v873 = vtanh.pop %v871
  %874 = vmatpush.msra.mxu0 %v161
  %875 = vmatpush.msra.mxu0 %v160
  %876 = vmatpush.msra.mxu0 %v159
  %877 = vmatpush.msra.mxu0 %v158
  %878 = vmatpush.msra.mxu0 %v157
  %879 = vmatpush.msra.mxu0 %v156
  %880 = vmatpush.msra.mxu0 %v155
  %881 = vmatpush.msra.mxu0 %v154
  %882 = vmatpush.msra.mxu0 %v153
  %883 = vmatpush.msra.mxu0 %v152
  %884 = vmatpush.msra.mxu0 %v151
  %885 = vmatpush.msra.mxu0 %v150
  %886 = vmatpush.msra.mxu0 %v149
  %887 = vmatpush.msra.mxu0 %v148
  %888 = vmatpush.msra.mxu0 %v147
  %889 = vmatpush.msra.mxu0 %v146
  %890 = vmatmul.f32.gmra.mxu0 %v872
  %v891 = vpop.f32.mrf.mxu0
  %v892 = vadd.f32 0.0, %v891
  %893 = vdwg.mxu0
  %894 = vmatpush.msra.mxu0 %v177
  %895 = vmatpush.msra.mxu0 %v176
  %896 = vmatpush.msra.mxu0 %v175
  %897 = vmatpush.msra.mxu0 %v174
  %898 = vmatpush.msra.mxu0 %v173
  %899 = vmatpush.msra.mxu0 %v172
  %900 = vmatpush.msra.mxu0 %v171
  %901 = vmatpush.msra.mxu0 %v170
  %902 = vmatpush.msra.mxu0 %v169
  %903 = vmatpush.msra.mxu0 %v168
  %904 = vmatpush.msra.mxu0 %v167
  %905 = vmatpush.msra.mxu0 %v166
  %906 = vmatpush.msra.mxu0 %v165
  %907 = vmatpush.msra.mxu0 %v164
  %908 = vmatpush.msra.mxu0 %v163
  %909 = vmatpush.msra.mxu0 %v162
  %910 = vmatmul.f32.gmra.mxu0 %v873
  %v911 = vpop.f32.mrf.mxu0
  %v912 = vadd.f32 %v892, %v911
  %913 = vdwg.mxu0
  %v914 = vsel %vm351, %v912, -inf
  %915 = vmax.xlane.f32.xlu0 %v914
  %v916 = vpop.xlane.xlu0 %915
  %v917 = vsub.f32 %v912, %v916
  %v918 = vmul.f32 %v917, 1.442695
  %v919 = vpow.pop %v918
  %v920 = vsel %vm351, %v919, 0.0
  %921 = vadd.xlane.f32.xlu0 %v920
  %v922 = vpop.xlane.xlu0 %921
  %v923 = vrcp.pop %v922
  %v924 = vmul.f32 %v922, %v923
  %v925 = vsub.f32 1.0, %v924
  %v926 = vmul.f32 %v923, %v925
  %v927 = vadd.f32 %v923, %v926
  %vm928 = vweird.f32 %v922
  %vm929 = vweird.f32 %v923
  %vm930 = vmor %vm928, %vm929
  %v931 = vsel %vm930, %v923, %v927
  %v932 = vand.u32 2147483647, %v922
  %vm933 = vcmp.eq.f32.partialorder %v932, 8.507059e+37
  %v934 = vand.u32 %v922, 2147483648
  %v935 = vor.u32 1.1754944e-38, %v934
  %v936 = vsel %vm933, %v935, %v931
  %v937 = vmul.f32 %v919, %v936
  %v938 = vmul.f32 %v937, %v300
  %v939 = vsel %vm351, %v938, 0.0
  %940 = vadd.xlane.f32.xlu0 %v939
  %v941 = vpop.xlane.xlu0 %940
  %v942 = vadd.f32 %v941, %v25
  %944 = vset.pattern.permute.xlu0 3
  %945 = vperm.xlu0 %944, %v942
  %v946 = vpop.permute.xlu0 %945
  %v948 = vmul.f32 %v946, %v386
  %v949 = vadd.f32 %v948, %v868
  %v950 = vadd.f32 %v949, %v389
  %v951 = vxor.u32 %v950, 2147483648
  %v952 = vmul.f32 %v951, 1.442695
  %v953 = vpow.pop %v952
  %v954 = vadd.f32 %v953, 1.0
  %v955 = vrcp.pop %v954
  %v956 = vmul.f32 %v954, %v955
  %v957 = vsub.f32 1.0, %v956
  %v958 = vmul.f32 %v955, %v957
  %v959 = vadd.f32 %v955, %v958
  %vm960 = vweird.f32 %v954
  %vm961 = vweird.f32 %v955
  %vm962 = vmor %vm960, %vm961
  %v963 = vsel %vm962, %v955, %v959
  %v964 = vand.u32 2147483647, %v954
  %vm965 = vcmp.eq.f32.partialorder %v964, 8.507059e+37
  %v966 = vand.u32 %v954, 2147483648
  %v967 = vor.u32 1.1754944e-38, %v966
  %v968 = vsel %vm965, %v967, %v963
  %v969 = vmul.f32 1.0, %v968
  %v970 = vtanh.pop %v950
  %v971 = vmul.f32 %v969, %v806
  %973 = vrot.lane.b32.xlu0 %v970, 64
  %v974 = vpop.permute.xlu0 %973
  %v976 = vmul.f32 %v969, %v974
  %978 = vrot.lane.b32.xlu0 %v976, 32
  %v979 = vpop.permute.xlu0 %978
  %v981 = vadd.f32 %v971, %v979
  %v982 = vtanh.pop %v981
  %984 = vrot.lane.b32.xlu0 %v982, 64
  %v985 = vpop.permute.xlu0 %984
  %v987 = vmul.f32 %v969, %v985
  %989 = vrot.lane.b32.xlu0 %v987, 32
  %v990 = vpop.permute.xlu0 %989
  %v992 = vsel %vm432, %v990, %v981
  %v994 = vsel %vm434, %v992, 0
  %996 = vmatpush.msra.mxu0 0.0
  %997 = vmatpush.msra.mxu0 0.0
  %998 = vmatpush.msra.mxu0 0.0
  %999 = vmatpush.msra.mxu0 0.0
  %1000 = vmatpush.msra.mxu0 0.0
  %1001 = vmatpush.msra.mxu0 0.0
  %1002 = vmatpush.msra.mxu0 0.0
  %1003 = vmatpush.msra.mxu0 0.0
  %1004 = vmatpush.msra.mxu0 %v143
  %1005 = vmatpush.msra.mxu0 %v140
  %1006 = vmatpush.msra.mxu0 %v137
  %1007 = vmatpush.msra.mxu0 %v134
  %1008 = vmatpush.msra.mxu0 %v131
  %1009 = vmatpush.msra.mxu0 %v128
  %1010 = vmatpush.msra.mxu0 %v125
  %1011 = vmatpush.msra.mxu0 %v122
  %1012 = vmatmul.f32.gmra.mxu0 %v994
  %v1013 = vpop.f32.mrf.mxu0
  %v1014 = vadd.f32 0.0, %v1013
  %1015 = vdwg.mxu0
  %1016 = vmatpush.msra.mxu0 0.0
  %1017 = vmatpush.msra.mxu0 0.0
  %1018 = vmatpush.msra.mxu0 0.0
  %1019 = vmatpush.msra.mxu0 0.0
  %1020 = vmatpush.msra.mxu0 0.0
  %1021 = vmatpush.msra.mxu0 0.0
  %1022 = vmatpush.msra.mxu0 0.0
  %1023 = vmatpush.msra.mxu0 0.0
  %1024 = vmatpush.msra.mxu0 %v144
  %1025 = vmatpush.msra.mxu0 %v141
  %1026 = vmatpush.msra.mxu0 %v138
  %1027 = vmatpush.msra.mxu0 %v135
  %1028 = vmatpush.msra.mxu0 %v132
  %1029 = vmatpush.msra.mxu0 %v129
  %1030 = vmatpush.msra.mxu0 %v126
  %1031 = vmatpush.msra.mxu0 %v123
  %1032 = vmatmul.f32.gmra.mxu0 %v994
  %v1033 = vpop.f32.mrf.mxu0
  %v1034 = vadd.f32 0.0, %v1033
  %1035 = vdwg.mxu0
  %1036 = vmatpush.msra.mxu0 0.0
  %1037 = vmatpush.msra.mxu0 0.0
  %1038 = vmatpush.msra.mxu0 0.0
  %1039 = vmatpush.msra.mxu0 0.0
  %1040 = vmatpush.msra.mxu0 0.0
  %1041 = vmatpush.msra.mxu0 0.0
  %1042 = vmatpush.msra.mxu0 0.0
  %1043 = vmatpush.msra.mxu0 0.0
  %1044 = vmatpush.msra.mxu0 %v145
  %1045 = vmatpush.msra.mxu0 %v142
  %1046 = vmatpush.msra.mxu0 %v139
  %1047 = vmatpush.msra.mxu0 %v136
  %1048 = vmatpush.msra.mxu0 %v133
  %1049 = vmatpush.msra.mxu0 %v130
  %1050 = vmatpush.msra.mxu0 %v127
  %1051 = vmatpush.msra.mxu0 %v124
  %1052 = vmatmul.f32.gmra.mxu0 %v994
  %v1053 = vpop.f32.mrf.mxu0
  %v1054 = vadd.f32 0.0, %v1053
  %1055 = vdwg.mxu0
  %v1056 = vadd.f32 %v1014, %v307
  %v1057 = vadd.f32 %v1034, %v308
  %v1058 = vtanh.pop %v1056
  %v1059 = vtanh.pop %v1057
  %1060 = vmatpush.msra.mxu0 %v161
  %1061 = vmatpush.msra.mxu0 %v160
  %1062 = vmatpush.msra.mxu0 %v159
  %1063 = vmatpush.msra.mxu0 %v158
  %1064 = vmatpush.msra.mxu0 %v157
  %1065 = vmatpush.msra.mxu0 %v156
  %1066 = vmatpush.msra.mxu0 %v155
  %1067 = vmatpush.msra.mxu0 %v154
  %1068 = vmatpush.msra.mxu0 %v153
  %1069 = vmatpush.msra.mxu0 %v152
  %1070 = vmatpush.msra.mxu0 %v151
  %1071 = vmatpush.msra.mxu0 %v150
  %1072 = vmatpush.msra.mxu0 %v149
  %1073 = vmatpush.msra.mxu0 %v148
  %1074 = vmatpush.msra.mxu0 %v147
  %1075 = vmatpush.msra.mxu0 %v146
  %1076 = vmatmul.f32.gmra.mxu0 %v1058
  %v1077 = vpop.f32.mrf.mxu0
  %v1078 = vadd.f32 0.0, %v1077
  %1079 = vdwg.mxu0
  %1080 = vmatpush.msra.mxu0 %v177
  %1081 = vmatpush.msra.mxu0 %v176
  %1082 = vmatpush.msra.mxu0 %v175
  %1083 = vmatpush.msra.mxu0 %v174
  %1084 = vmatpush.msra.mxu0 %v173
  %1085 = vmatpush.msra.mxu0 %v172
  %1086 = vmatpush.msra.mxu0 %v171
  %1087 = vmatpush.msra.mxu0 %v170
  %1088 = vmatpush.msra.mxu0 %v169
  %1089 = vmatpush.msra.mxu0 %v168
  %1090 = vmatpush.msra.mxu0 %v167
  %1091 = vmatpush.msra.mxu0 %v166
  %1092 = vmatpush.msra.mxu0 %v165
  %1093 = vmatpush.msra.mxu0 %v164
  %1094 = vmatpush.msra.mxu0 %v163
  %1095 = vmatpush.msra.mxu0 %v162
  %1096 = vmatmul.f32.gmra.mxu0 %v1059
  %v1097 = vpop.f32.mrf.mxu0
  %v1098 = vadd.f32 %v1078, %v1097
  %1099 = vdwg.mxu0
  %v1100 = vsel %vm351, %v1098, -inf
  %1101 = vmax.xlane.f32.xlu0 %v1100
  %v1102 = vpop.xlane.xlu0 %1101
  %v1103 = vsub.f32 %v1098, %v1102
  %v1104 = vmul.f32 %v1103, 1.442695
  %v1105 = vpow.pop %v1104
  %v1106 = vsel %vm351, %v1105, 0.0
  %1107 = vadd.xlane.f32.xlu0 %v1106
  %v1108 = vpop.xlane.xlu0 %1107
  %v1109 = vrcp.pop %v1108
  %v1110 = vmul.f32 %v1108, %v1109
  %v1111 = vsub.f32 1.0, %v1110
  %v1112 = vmul.f32 %v1109, %v1111
  %v1113 = vadd.f32 %v1109, %v1112
  %vm1114 = vweird.f32 %v1108
  %vm1115 = vweird.f32 %v1109
  %vm1116 = vmor %vm1114, %vm1115
  %v1117 = vsel %vm1116, %v1109, %v1113
  %v1118 = vand.u32 2147483647, %v1108
  %vm1119 = vcmp.eq.f32.partialorder %v1118, 8.507059e+37
  %v1120 = vand.u32 %v1108, 2147483648
  %v1121 = vor.u32 1.1754944e-38, %v1120
  %v1122 = vsel %vm1119, %v1121, %v1117
  %v1123 = vmul.f32 %v1105, %v1122
  %v1124 = vmul.f32 %v1123, %v300
  %v1125 = vsel %vm351, %v1124, 0.0
  %1126 = vadd.xlane.f32.xlu0 %v1125
  %v1127 = vpop.xlane.xlu0 %1126
  %v1128 = vadd.f32 %v1127, %v25
  %1130 = vset.pattern.permute.xlu0 4
  %1131 = vperm.xlu0 %1130, %v1128
  %v1132 = vpop.permute.xlu0 %1131
  %v1134 = vmul.f32 %v1132, %v386
  %v1135 = vadd.f32 %v1134, %v1054
  %v1136 = vadd.f32 %v1135, %v389
  %v1137 = vxor.u32 %v1136, 2147483648
  %v1138 = vmul.f32 %v1137, 1.442695
  %v1139 = vpow.pop %v1138
  %v1140 = vadd.f32 %v1139, 1.0
  %v1141 = vrcp.pop %v1140
  %v1142 = vmul.f32 %v1140, %v1141
  %v1143 = vsub.f32 1.0, %v1142
  %v1144 = vmul.f32 %v1141, %v1143
  %v1145 = vadd.f32 %v1141, %v1144
  %vm1146 = vweird.f32 %v1140
  %vm1147 = vweird.f32 %v1141
  %vm1148 = vmor %vm1146, %vm1147
  %v1149 = vsel %vm1148, %v1141, %v1145
  %v1150 = vand.u32 2147483647, %v1140
  %vm1151 = vcmp.eq.f32.partialorder %v1150, 8.507059e+37
  %v1152 = vand.u32 %v1140, 2147483648
  %v1153 = vor.u32 1.1754944e-38, %v1152
  %v1154 = vsel %vm1151, %v1153, %v1149
  %v1155 = vmul.f32 1.0, %v1154
  %v1156 = vtanh.pop %v1136
  %v1157 = vmul.f32 %v1155, %v992
  %1159 = vrot.lane.b32.xlu0 %v1156, 64
  %v1160 = vpop.permute.xlu0 %1159
  %v1162 = vmul.f32 %v1155, %v1160
  %1164 = vrot.lane.b32.xlu0 %v1162, 32
  %v1165 = vpop.permute.xlu0 %1164
  %v1167 = vadd.f32 %v1157, %v1165
  %v1168 = vtanh.pop %v1167
  %1170 = vrot.lane.b32.xlu0 %v1168, 64
  %v1171 = vpop.permute.xlu0 %1170
  %v1173 = vmul.f32 %v1155, %v1171
  %1175 = vrot.lane.b32.xlu0 %v1173, 32
  %v1176 = vpop.permute.xlu0 %1175
  %v1178 = vsel %vm432, %v1176, %v1167
  %v1180 = vsel %vm434, %v1178, 0
  %1182 = vmatpush.msra.mxu0 0.0
  %1183 = vmatpush.msra.mxu0 0.0
  %1184 = vmatpush.msra.mxu0 0.0
  %1185 = vmatpush.msra.mxu0 0.0
  %1186 = vmatpush.msra.mxu0 0.0
  %1187 = vmatpush.msra.mxu0 0.0
  %1188 = vmatpush.msra.mxu0 0.0
  %1189 = vmatpush.msra.mxu0 0.0
  %1190 = vmatpush.msra.mxu0 %v143
  %1191 = vmatpush.msra.mxu0 %v140
  %1192 = vmatpush.msra.mxu0 %v137
  %1193 = vmatpush.msra.mxu0 %v134
  %1194 = vmatpush.msra.mxu0 %v131
  %1195 = vmatpush.msra.mxu0 %v128
  %1196 = vmatpush.msra.mxu0 %v125
  %1197 = vmatpush.msra.mxu0 %v122
  %1198 = vmatmul.f32.gmra.mxu0 %v1180
  %v1199 = vpop.f32.mrf.mxu0
  %v1200 = vadd.f32 0.0, %v1199
  %1201 = vdwg.mxu0
  %1202 = vmatpush.msra.mxu0 0.0
  %1203 = vmatpush.msra.mxu0 0.0
  %1204 = vmatpush.msra.mxu0 0.0
  %1205 = vmatpush.msra.mxu0 0.0
  %1206 = vmatpush.msra.mxu0 0.0
  %1207 = vmatpush.msra.mxu0 0.0
  %1208 = vmatpush.msra.mxu0 0.0
  %1209 = vmatpush.msra.mxu0 0.0
  %1210 = vmatpush.msra.mxu0 %v144
  %1211 = vmatpush.msra.mxu0 %v141
  %1212 = vmatpush.msra.mxu0 %v138
  %1213 = vmatpush.msra.mxu0 %v135
  %1214 = vmatpush.msra.mxu0 %v132
  %1215 = vmatpush.msra.mxu0 %v129
  %1216 = vmatpush.msra.mxu0 %v126
  %1217 = vmatpush.msra.mxu0 %v123
  %1218 = vmatmul.f32.gmra.mxu0 %v1180
  %v1219 = vpop.f32.mrf.mxu0
  %v1220 = vadd.f32 0.0, %v1219
  %1221 = vdwg.mxu0
  %1222 = vmatpush.msra.mxu0 0.0
  %1223 = vmatpush.msra.mxu0 0.0
  %1224 = vmatpush.msra.mxu0 0.0
  %1225 = vmatpush.msra.mxu0 0.0
  %1226 = vmatpush.msra.mxu0 0.0
  %1227 = vmatpush.msra.mxu0 0.0
  %1228 = vmatpush.msra.mxu0 0.0
  %1229 = vmatpush.msra.mxu0 0.0
  %1230 = vmatpush.msra.mxu0 %v145
  %1231 = vmatpush.msra.mxu0 %v142
  %1232 = vmatpush.msra.mxu0 %v139
  %1233 = vmatpush.msra.mxu0 %v136
  %1234 = vmatpush.msra.mxu0 %v133
  %1235 = vmatpush.msra.mxu0 %v130
  %1236 = vmatpush.msra.mxu0 %v127
  %1237 = vmatpush.msra.mxu0 %v124
  %1238 = vmatmul.f32.gmra.mxu0 %v1180
  %v1239 = vpop.f32.mrf.mxu0
  %v1240 = vadd.f32 0.0, %v1239
  %1241 = vdwg.mxu0
  %v1242 = vadd.f32 %v1200, %v307
  %v1243 = vadd.f32 %v1220, %v308
  %v1244 = vtanh.pop %v1242
  %v1245 = vtanh.pop %v1243
  %1246 = vmatpush.msra.mxu0 %v161
  %1247 = vmatpush.msra.mxu0 %v160
  %1248 = vmatpush.msra.mxu0 %v159
  %1249 = vmatpush.msra.mxu0 %v158
  %1250 = vmatpush.msra.mxu0 %v157
  %1251 = vmatpush.msra.mxu0 %v156
  %1252 = vmatpush.msra.mxu0 %v155
  %1253 = vmatpush.msra.mxu0 %v154
  %1254 = vmatpush.msra.mxu0 %v153
  %1255 = vmatpush.msra.mxu0 %v152
  %1256 = vmatpush.msra.mxu0 %v151
  %1257 = vmatpush.msra.mxu0 %v150
  %1258 = vmatpush.msra.mxu0 %v149
  %1259 = vmatpush.msra.mxu0 %v148
  %1260 = vmatpush.msra.mxu0 %v147
  %1261 = vmatpush.msra.mxu0 %v146
  %1262 = vmatmul.f32.gmra.mxu0 %v1244
  %v1263 = vpop.f32.mrf.mxu0
  %v1264 = vadd.f32 0.0, %v1263
  %1265 = vdwg.mxu0
  %1266 = vmatpush.msra.mxu0 %v177
  %1267 = vmatpush.msra.mxu0 %v176
  %1268 = vmatpush.msra.mxu0 %v175
  %1269 = vmatpush.msra.mxu0 %v174
  %1270 = vmatpush.msra.mxu0 %v173
  %1271 = vmatpush.msra.mxu0 %v172
  %1272 = vmatpush.msra.mxu0 %v171
  %1273 = vmatpush.msra.mxu0 %v170
  %1274 = vmatpush.msra.mxu0 %v169
  %1275 = vmatpush.msra.mxu0 %v168
  %1276 = vmatpush.msra.mxu0 %v167
  %1277 = vmatpush.msra.mxu0 %v166
  %1278 = vmatpush.msra.mxu0 %v165
  %1279 = vmatpush.msra.mxu0 %v164
  %1280 = vmatpush.msra.mxu0 %v163
  %1281 = vmatpush.msra.mxu0 %v162
  %1282 = vmatmul.f32.gmra.mxu0 %v1245
  %v1283 = vpop.f32.mrf.mxu0
  %v1284 = vadd.f32 %v1264, %v1283
  %1285 = vdwg.mxu0
  %v1286 = vsel %vm351, %v1284, -inf
  %1287 = vmax.xlane.f32.xlu0 %v1286
  %v1288 = vpop.xlane.xlu0 %1287
  %v1289 = vsub.f32 %v1284, %v1288
  %v1290 = vmul.f32 %v1289, 1.442695
  %v1291 = vpow.pop %v1290
  %v1292 = vsel %vm351, %v1291, 0.0
  %1293 = vadd.xlane.f32.xlu0 %v1292
  %v1294 = vpop.xlane.xlu0 %1293
  %v1295 = vrcp.pop %v1294
  %v1296 = vmul.f32 %v1294, %v1295
  %v1297 = vsub.f32 1.0, %v1296
  %v1298 = vmul.f32 %v1295, %v1297
  %v1299 = vadd.f32 %v1295, %v1298
  %vm1300 = vweird.f32 %v1294
  %vm1301 = vweird.f32 %v1295
  %vm1302 = vmor %vm1300, %vm1301
  %v1303 = vsel %vm1302, %v1295, %v1299
  %v1304 = vand.u32 2147483647, %v1294
  %vm1305 = vcmp.eq.f32.partialorder %v1304, 8.507059e+37
  %v1306 = vand.u32 %v1294, 2147483648
  %v1307 = vor.u32 1.1754944e-38, %v1306
  %v1308 = vsel %vm1305, %v1307, %v1303
  %v1309 = vmul.f32 %v1291, %v1308
  %v1310 = vmul.f32 %v1309, %v300
  %v1311 = vsel %vm351, %v1310, 0.0
  %1312 = vadd.xlane.f32.xlu0 %v1311
  %v1313 = vpop.xlane.xlu0 %1312
  %v1314 = vadd.f32 %v1313, %v25
  %1316 = vset.pattern.permute.xlu0 5
  %1317 = vperm.xlu0 %1316, %v1314
  %v1318 = vpop.permute.xlu0 %1317
  %v1320 = vmul.f32 %v1318, %v386
  %v1321 = vadd.f32 %v1320, %v1240
  %v1322 = vadd.f32 %v1321, %v389
  %v1323 = vxor.u32 %v1322, 2147483648
  %v1324 = vmul.f32 %v1323, 1.442695
  %v1325 = vpow.pop %v1324
  %v1326 = vadd.f32 %v1325, 1.0
  %v1327 = vrcp.pop %v1326
  %v1328 = vmul.f32 %v1326, %v1327
  %v1329 = vsub.f32 1.0, %v1328
  %v1330 = vmul.f32 %v1327, %v1329
  %v1331 = vadd.f32 %v1327, %v1330
  %vm1332 = vweird.f32 %v1326
  %vm1333 = vweird.f32 %v1327
  %vm1334 = vmor %vm1332, %vm1333
  %v1335 = vsel %vm1334, %v1327, %v1331
  %v1336 = vand.u32 2147483647, %v1326
  %vm1337 = vcmp.eq.f32.partialorder %v1336, 8.507059e+37
  %v1338 = vand.u32 %v1326, 2147483648
  %v1339 = vor.u32 1.1754944e-38, %v1338
  %v1340 = vsel %vm1337, %v1339, %v1335
  %v1341 = vmul.f32 1.0, %v1340
  %v1342 = vtanh.pop %v1322
  %v1343 = vmul.f32 %v1341, %v1178
  %1345 = vrot.lane.b32.xlu0 %v1342, 64
  %v1346 = vpop.permute.xlu0 %1345
  %v1348 = vmul.f32 %v1341, %v1346
  %1350 = vrot.lane.b32.xlu0 %v1348, 32
  %v1351 = vpop.permute.xlu0 %1350
  %v1353 = vadd.f32 %v1343, %v1351
  %v1354 = vtanh.pop %v1353
  %1356 = vrot.lane.b32.xlu0 %v1354, 64
  %v1357 = vpop.permute.xlu0 %1356
  %v1359 = vmul.f32 %v1341, %v1357
  %1361 = vrot.lane.b32.xlu0 %v1359, 32
  %v1362 = vpop.permute.xlu0 %1361
  %v1364 = vsel %vm432, %v1362, %v1353
  %v1366 = vsel %vm434, %v1364, 0
  %1368 = vmatpush.msra.mxu0 0.0
  %1369 = vmatpush.msra.mxu0 0.0
  %1370 = vmatpush.msra.mxu0 0.0
  %1371 = vmatpush.msra.mxu0 0.0
  %1372 = vmatpush.msra.mxu0 0.0
  %1373 = vmatpush.msra.mxu0 0.0
  %1374 = vmatpush.msra.mxu0 0.0
  %1375 = vmatpush.msra.mxu0 0.0
  %1376 = vmatpush.msra.mxu0 %v143
  %1377 = vmatpush.msra.mxu0 %v140
  %1378 = vmatpush.msra.mxu0 %v137
  %1379 = vmatpush.msra.mxu0 %v134
  %1380 = vmatpush.msra.mxu0 %v131
  %1381 = vmatpush.msra.mxu0 %v128
  %1382 = vmatpush.msra.mxu0 %v125
  %1383 = vmatpush.msra.mxu0 %v122
  %1384 = vmatmul.f32.gmra.mxu0 %v1366
  %v1385 = vpop.f32.mrf.mxu0
  %v1386 = vadd.f32 0.0, %v1385
  %1387 = vdwg.mxu0
  %1388 = vmatpush.msra.mxu0 0.0
  %1389 = vmatpush.msra.mxu0 0.0
  %1390 = vmatpush.msra.mxu0 0.0
  %1391 = vmatpush.msra.mxu0 0.0
  %1392 = vmatpush.msra.mxu0 0.0
  %1393 = vmatpush.msra.mxu0 0.0
  %1394 = vmatpush.msra.mxu0 0.0
  %1395 = vmatpush.msra.mxu0 0.0
  %1396 = vmatpush.msra.mxu0 %v144
  %1397 = vmatpush.msra.mxu0 %v141
  %1398 = vmatpush.msra.mxu0 %v138
  %1399 = vmatpush.msra.mxu0 %v135
  %1400 = vmatpush.msra.mxu0 %v132
  %1401 = vmatpush.msra.mxu0 %v129
  %1402 = vmatpush.msra.mxu0 %v126
  %1403 = vmatpush.msra.mxu0 %v123
  %1404 = vmatmul.f32.gmra.mxu0 %v1366
  %v1405 = vpop.f32.mrf.mxu0
  %v1406 = vadd.f32 0.0, %v1405
  %1407 = vdwg.mxu0
  %1408 = vmatpush.msra.mxu0 0.0
  %1409 = vmatpush.msra.mxu0 0.0
  %1410 = vmatpush.msra.mxu0 0.0
  %1411 = vmatpush.msra.mxu0 0.0
  %1412 = vmatpush.msra.mxu0 0.0
  %1413 = vmatpush.msra.mxu0 0.0
  %1414 = vmatpush.msra.mxu0 0.0
  %1415 = vmatpush.msra.mxu0 0.0
  %1416 = vmatpush.msra.mxu0 %v145
  %1417 = vmatpush.msra.mxu0 %v142
  %1418 = vmatpush.msra.mxu0 %v139
  %1419 = vmatpush.msra.mxu0 %v136
  %1420 = vmatpush.msra.mxu0 %v133
  %1421 = vmatpush.msra.mxu0 %v130
  %1422 = vmatpush.msra.mxu0 %v127
  %1423 = vmatpush.msra.mxu0 %v124
  %1424 = vmatmul.f32.gmra.mxu0 %v1366
  %v1425 = vpop.f32.mrf.mxu0
  %v1426 = vadd.f32 0.0, %v1425
  %1427 = vdwg.mxu0
  %v1428 = vadd.f32 %v1386, %v307
  %v1429 = vadd.f32 %v1406, %v308
  %v1430 = vtanh.pop %v1428
  %v1431 = vtanh.pop %v1429
  %1432 = vmatpush.msra.mxu0 %v161
  %1433 = vmatpush.msra.mxu0 %v160
  %1434 = vmatpush.msra.mxu0 %v159
  %1435 = vmatpush.msra.mxu0 %v158
  %1436 = vmatpush.msra.mxu0 %v157
  %1437 = vmatpush.msra.mxu0 %v156
  %1438 = vmatpush.msra.mxu0 %v155
  %1439 = vmatpush.msra.mxu0 %v154
  %1440 = vmatpush.msra.mxu0 %v153
  %1441 = vmatpush.msra.mxu0 %v152
  %1442 = vmatpush.msra.mxu0 %v151
  %1443 = vmatpush.msra.mxu0 %v150
  %1444 = vmatpush.msra.mxu0 %v149
  %1445 = vmatpush.msra.mxu0 %v148
  %1446 = vmatpush.msra.mxu0 %v147
  %1447 = vmatpush.msra.mxu0 %v146
  %1448 = vmatmul.f32.gmra.mxu0 %v1430
  %v1449 = vpop.f32.mrf.mxu0
  %v1450 = vadd.f32 0.0, %v1449
  %1451 = vdwg.mxu0
  %1452 = vmatpush.msra.mxu0 %v177
  %1453 = vmatpush.msra.mxu0 %v176
  %1454 = vmatpush.msra.mxu0 %v175
  %1455 = vmatpush.msra.mxu0 %v174
  %1456 = vmatpush.msra.mxu0 %v173
  %1457 = vmatpush.msra.mxu0 %v172
  %1458 = vmatpush.msra.mxu0 %v171
  %1459 = vmatpush.msra.mxu0 %v170
  %1460 = vmatpush.msra.mxu0 %v169
  %1461 = vmatpush.msra.mxu0 %v168
  %1462 = vmatpush.msra.mxu0 %v167
  %1463 = vmatpush.msra.mxu0 %v166
  %1464 = vmatpush.msra.mxu0 %v165
  %1465 = vmatpush.msra.mxu0 %v164
  %1466 = vmatpush.msra.mxu0 %v163
  %1467 = vmatpush.msra.mxu0 %v162
  %1468 = vmatmul.f32.gmra.mxu0 %v1431
  %v1469 = vpop.f32.mrf.mxu0
  %v1470 = vadd.f32 %v1450, %v1469
  %1471 = vdwg.mxu0
  %v1472 = vsel %vm351, %v1470, -inf
  %1473 = vmax.xlane.f32.xlu0 %v1472
  %v1474 = vpop.xlane.xlu0 %1473
  %v1475 = vsub.f32 %v1470, %v1474
  %v1476 = vmul.f32 %v1475, 1.442695
  %v1477 = vpow.pop %v1476
  %v1478 = vsel %vm351, %v1477, 0.0
  %1479 = vadd.xlane.f32.xlu0 %v1478
  %v1480 = vpop.xlane.xlu0 %1479
  %v1481 = vrcp.pop %v1480
  %v1482 = vmul.f32 %v1480, %v1481
  %v1483 = vsub.f32 1.0, %v1482
  %v1484 = vmul.f32 %v1481, %v1483
  %v1485 = vadd.f32 %v1481, %v1484
  %vm1486 = vweird.f32 %v1480
  %vm1487 = vweird.f32 %v1481
  %vm1488 = vmor %vm1486, %vm1487
  %v1489 = vsel %vm1488, %v1481, %v1485
  %v1490 = vand.u32 2147483647, %v1480
  %vm1491 = vcmp.eq.f32.partialorder %v1490, 8.507059e+37
  %v1492 = vand.u32 %v1480, 2147483648
  %v1493 = vor.u32 1.1754944e-38, %v1492
  %v1494 = vsel %vm1491, %v1493, %v1489
  %v1495 = vmul.f32 %v1477, %v1494
  %v1496 = vmul.f32 %v1495, %v300
  %v1497 = vsel %vm351, %v1496, 0.0
  %1498 = vadd.xlane.f32.xlu0 %v1497
  %v1499 = vpop.xlane.xlu0 %1498
  %v1500 = vadd.f32 %v1499, %v25
  %1502 = vset.pattern.permute.xlu0 6
  %1503 = vperm.xlu0 %1502, %v1500
  %v1504 = vpop.permute.xlu0 %1503
  %v1506 = vmul.f32 %v1504, %v386
  %v1507 = vadd.f32 %v1506, %v1426
  %v1508 = vadd.f32 %v1507, %v389
  %v1509 = vxor.u32 %v1508, 2147483648
  %v1510 = vmul.f32 %v1509, 1.442695
  %v1511 = vpow.pop %v1510
  %v1512 = vadd.f32 %v1511, 1.0
  %v1513 = vrcp.pop %v1512
  %v1514 = vmul.f32 %v1512, %v1513
  %v1515 = vsub.f32 1.0, %v1514
  %v1516 = vmul.f32 %v1513, %v1515
  %v1517 = vadd.f32 %v1513, %v1516
  %vm1518 = vweird.f32 %v1512
  %vm1519 = vweird.f32 %v1513
  %vm1520 = vmor %vm1518, %vm1519
  %v1521 = vsel %vm1520, %v1513, %v1517
  %v1522 = vand.u32 2147483647, %v1512
  %vm1523 = vcmp.eq.f32.partialorder %v1522, 8.507059e+37
  %v1524 = vand.u32 %v1512, 2147483648
  %v1525 = vor.u32 1.1754944e-38, %v1524
  %v1526 = vsel %vm1523, %v1525, %v1521
  %v1527 = vmul.f32 1.0, %v1526
  %v1528 = vtanh.pop %v1508
  %v1529 = vmul.f32 %v1527, %v1364
  %1531 = vrot.lane.b32.xlu0 %v1528, 64
  %v1532 = vpop.permute.xlu0 %1531
  %v1534 = vmul.f32 %v1527, %v1532
  %1536 = vrot.lane.b32.xlu0 %v1534, 32
  %v1537 = vpop.permute.xlu0 %1536
  %v1539 = vadd.f32 %v1529, %v1537
  %v1540 = vtanh.pop %v1539
  %1542 = vrot.lane.b32.xlu0 %v1540, 64
  %v1543 = vpop.permute.xlu0 %1542
  %v1545 = vmul.f32 %v1527, %v1543
  %1547 = vrot.lane.b32.xlu0 %v1545, 32
  %v1548 = vpop.permute.xlu0 %1547
  %v1550 = vsel %vm432, %v1548, %v1539
  %v1552 = vsel %vm434, %v1550, 0
  %1554 = vmatpush.msra.mxu0 0.0
  %1555 = vmatpush.msra.mxu0 0.0
  %1556 = vmatpush.msra.mxu0 0.0
  %1557 = vmatpush.msra.mxu0 0.0
  %1558 = vmatpush.msra.mxu0 0.0
  %1559 = vmatpush.msra.mxu0 0.0
  %1560 = vmatpush.msra.mxu0 0.0
  %1561 = vmatpush.msra.mxu0 0.0
  %1562 = vmatpush.msra.mxu0 %v143
  %1563 = vmatpush.msra.mxu0 %v140
  %1564 = vmatpush.msra.mxu0 %v137
  %1565 = vmatpush.msra.mxu0 %v134
  %1566 = vmatpush.msra.mxu0 %v131
  %1567 = vmatpush.msra.mxu0 %v128
  %1568 = vmatpush.msra.mxu0 %v125
  %1569 = vmatpush.msra.mxu0 %v122
  %1570 = vmatmul.f32.gmra.mxu0 %v1552
  %v1571 = vpop.f32.mrf.mxu0
  %v1572 = vadd.f32 0.0, %v1571
  %1573 = vdwg.mxu0
  %1574 = vmatpush.msra.mxu0 0.0
  %1575 = vmatpush.msra.mxu0 0.0
  %1576 = vmatpush.msra.mxu0 0.0
  %1577 = vmatpush.msra.mxu0 0.0
  %1578 = vmatpush.msra.mxu0 0.0
  %1579 = vmatpush.msra.mxu0 0.0
  %1580 = vmatpush.msra.mxu0 0.0
  %1581 = vmatpush.msra.mxu0 0.0
  %1582 = vmatpush.msra.mxu0 %v144
  %1583 = vmatpush.msra.mxu0 %v141
  %1584 = vmatpush.msra.mxu0 %v138
  %1585 = vmatpush.msra.mxu0 %v135
  %1586 = vmatpush.msra.mxu0 %v132
  %1587 = vmatpush.msra.mxu0 %v129
  %1588 = vmatpush.msra.mxu0 %v126
  %1589 = vmatpush.msra.mxu0 %v123
  %1590 = vmatmul.f32.gmra.mxu0 %v1552
  %v1591 = vpop.f32.mrf.mxu0
  %v1592 = vadd.f32 0.0, %v1591
  %1593 = vdwg.mxu0
  %1594 = vmatpush.msra.mxu0 0.0
  %1595 = vmatpush.msra.mxu0 0.0
  %1596 = vmatpush.msra.mxu0 0.0
  %1597 = vmatpush.msra.mxu0 0.0
  %1598 = vmatpush.msra.mxu0 0.0
  %1599 = vmatpush.msra.mxu0 0.0
  %1600 = vmatpush.msra.mxu0 0.0
  %1601 = vmatpush.msra.mxu0 0.0
  %1602 = vmatpush.msra.mxu0 %v145
  %1603 = vmatpush.msra.mxu0 %v142
  %1604 = vmatpush.msra.mxu0 %v139
  %1605 = vmatpush.msra.mxu0 %v136
  %1606 = vmatpush.msra.mxu0 %v133
  %1607 = vmatpush.msra.mxu0 %v130
  %1608 = vmatpush.msra.mxu0 %v127
  %1609 = vmatpush.msra.mxu0 %v124
  %1610 = vmatmul.f32.gmra.mxu0 %v1552
  %v1611 = vpop.f32.mrf.mxu0
  %v1612 = vadd.f32 0.0, %v1611
  %1613 = vdwg.mxu0
  %v1614 = vadd.f32 %v1572, %v307
  %v1615 = vadd.f32 %v1592, %v308
  %v1616 = vtanh.pop %v1614
  %v1617 = vtanh.pop %v1615
  %1618 = vmatpush.msra.mxu0 %v161
  %1619 = vmatpush.msra.mxu0 %v160
  %1620 = vmatpush.msra.mxu0 %v159
  %1621 = vmatpush.msra.mxu0 %v158
  %1622 = vmatpush.msra.mxu0 %v157
  %1623 = vmatpush.msra.mxu0 %v156
  %1624 = vmatpush.msra.mxu0 %v155
  %1625 = vmatpush.msra.mxu0 %v154
  %1626 = vmatpush.msra.mxu0 %v153
  %1627 = vmatpush.msra.mxu0 %v152
  %1628 = vmatpush.msra.mxu0 %v151
  %1629 = vmatpush.msra.mxu0 %v150
  %1630 = vmatpush.msra.mxu0 %v149
  %1631 = vmatpush.msra.mxu0 %v148
  %1632 = vmatpush.msra.mxu0 %v147
  %1633 = vmatpush.msra.mxu0 %v146
  %1634 = vmatmul.f32.gmra.mxu0 %v1616
  %v1635 = vpop.f32.mrf.mxu0
  %v1636 = vadd.f32 0.0, %v1635
  %1637 = vdwg.mxu0
  %1638 = vmatpush.msra.mxu0 %v177
  %1639 = vmatpush.msra.mxu0 %v176
  %1640 = vmatpush.msra.mxu0 %v175
  %1641 = vmatpush.msra.mxu0 %v174
  %1642 = vmatpush.msra.mxu0 %v173
  %1643 = vmatpush.msra.mxu0 %v172
  %1644 = vmatpush.msra.mxu0 %v171
  %1645 = vmatpush.msra.mxu0 %v170
  %1646 = vmatpush.msra.mxu0 %v169
  %1647 = vmatpush.msra.mxu0 %v168
  %1648 = vmatpush.msra.mxu0 %v167
  %1649 = vmatpush.msra.mxu0 %v166
  %1650 = vmatpush.msra.mxu0 %v165
  %1651 = vmatpush.msra.mxu0 %v164
  %1652 = vmatpush.msra.mxu0 %v163
  %1653 = vmatpush.msra.mxu0 %v162
  %1654 = vmatmul.f32.gmra.mxu0 %v1617
  %v1655 = vpop.f32.mrf.mxu0
  %v1656 = vadd.f32 %v1636, %v1655
  %1657 = vdwg.mxu0
  %v1658 = vsel %vm351, %v1656, -inf
  %1659 = vmax.xlane.f32.xlu0 %v1658
  %v1660 = vpop.xlane.xlu0 %1659
  %v1661 = vsub.f32 %v1656, %v1660
  %v1662 = vmul.f32 %v1661, 1.442695
  %v1663 = vpow.pop %v1662
  %v1664 = vsel %vm351, %v1663, 0.0
  %1665 = vadd.xlane.f32.xlu0 %v1664
  %v1666 = vpop.xlane.xlu0 %1665
  %v1667 = vrcp.pop %v1666
  %v1668 = vmul.f32 %v1666, %v1667
  %v1669 = vsub.f32 1.0, %v1668
  %v1670 = vmul.f32 %v1667, %v1669
  %v1671 = vadd.f32 %v1667, %v1670
  %vm1672 = vweird.f32 %v1666
  %vm1673 = vweird.f32 %v1667
  %vm1674 = vmor %vm1672, %vm1673
  %v1675 = vsel %vm1674, %v1667, %v1671
  %v1676 = vand.u32 2147483647, %v1666
  %vm1677 = vcmp.eq.f32.partialorder %v1676, 8.507059e+37
  %v1678 = vand.u32 %v1666, 2147483648
  %v1679 = vor.u32 1.1754944e-38, %v1678
  %v1680 = vsel %vm1677, %v1679, %v1675
  %v1681 = vmul.f32 %v1663, %v1680
  %v1682 = vmul.f32 %v1681, %v300
  %v1683 = vsel %vm351, %v1682, 0.0
  %1684 = vadd.xlane.f32.xlu0 %v1683
  %v1685 = vpop.xlane.xlu0 %1684
  %v1686 = vadd.f32 %v1685, %v25
  %1688 = vset.pattern.permute.xlu0 7
  %1689 = vperm.xlu0 %1688, %v1686
  %v1690 = vpop.permute.xlu0 %1689
  %v1692 = vmul.f32 %v1690, %v386
  %v1693 = vadd.f32 %v1692, %v1612
  %v1694 = vadd.f32 %v1693, %v389
  %v1695 = vxor.u32 %v1694, 2147483648
  %v1696 = vmul.f32 %v1695, 1.442695
  %v1697 = vpow.pop %v1696
  %v1698 = vadd.f32 %v1697, 1.0
  %v1699 = vrcp.pop %v1698
  %v1700 = vmul.f32 %v1698, %v1699
  %v1701 = vsub.f32 1.0, %v1700
  %v1702 = vmul.f32 %v1699, %v1701
  %v1703 = vadd.f32 %v1699, %v1702
  %vm1704 = vweird.f32 %v1698
  %vm1705 = vweird.f32 %v1699
  %vm1706 = vmor %vm1704, %vm1705
  %v1707 = vsel %vm1706, %v1699, %v1703
  %v1708 = vand.u32 2147483647, %v1698
  %vm1709 = vcmp.eq.f32.partialorder %v1708, 8.507059e+37
  %v1710 = vand.u32 %v1698, 2147483648
  %v1711 = vor.u32 1.1754944e-38, %v1710
  %v1712 = vsel %vm1709, %v1711, %v1707
  %v1713 = vmul.f32 1.0, %v1712
  %v1714 = vtanh.pop %v1694
  %v1715 = vmul.f32 %v1713, %v1550
  %1717 = vrot.lane.b32.xlu0 %v1714, 64
  %v1718 = vpop.permute.xlu0 %1717
  %v1720 = vmul.f32 %v1713, %v1718
  %1722 = vrot.lane.b32.xlu0 %v1720, 32
  %v1723 = vpop.permute.xlu0 %1722
  %v1725 = vadd.f32 %v1715, %v1723
  %v1726 = vtanh.pop %v1725
  %1728 = vrot.lane.b32.xlu0 %v1726, 64
  %v1729 = vpop.permute.xlu0 %1728
  %v1731 = vmul.f32 %v1713, %v1729
  %1733 = vrot.lane.b32.xlu0 %v1731, 32
  %v1734 = vpop.permute.xlu0 %1733
  %v1736 = vsel %vm432, %v1734, %v1725
  %v1737 = vperm.slane %v180, 0
  %v1738 = vmul.f32 %v1736, %v1737
  %v1739 = vsel %vm432, %v1738, 0.0
  %1740 = vadd.xlane.f32.xlu0 %v1739
  %v1741 = vpop.xlane.xlu0 %1740
  %1743 = vrot.lane.b32.xlu0 %v300, 120
  %v1744 = vpop.permute.xlu0 %1743
  %v1746 = vmul.f32 %v1681, %v1744
  %v1747 = vsel %vm351, %v1746, 0.0
  %1748 = vadd.xlane.f32.xlu0 %v1747
  %v1749 = vpop.xlane.xlu0 %1748
  %v1750 = vadd.f32 %v1741, %v1749
  %v1751 = vadd.f32 %v1750, %v1737
  %1753 = vset.pattern.permute.xlu0 32
  %1754 = vperm.xlu0 %1753, %v1751
  %v1755 = vpop.permute.xlu0 %1754
  %1757 = vst [vmem:[%s6] sm:$0xff] %v1755
  // Predicated region
  $region26: #{decoder_rnn_pallas.1} parent=0 // pred_check
    _
  $region27: #{decoder_rnn_pallas.1} parent=0 // pred_check_branch
    %1759 = sbr.rel (0) target = $region29
  $region28: #{decoder_rnn_pallas.1} parent=0 // pred_region
    _
  $region29: #{decoder_rnn_pallas.1} parent=0 // pred_fallthru
    _
  // Predicated region
  $region30: #{decoder_rnn_pallas.1} parent=0 // pred_check
    _
  $region31: #{decoder_rnn_pallas.1} parent=0 // pred_check_branch
    %1761 = sbr.rel (0) target = $region33
  $region32: #{decoder_rnn_pallas.1} parent=0 // pred_region
    _
  $region33: #{decoder_rnn_pallas.1} parent=0 // pred_fallthru
    _

</llo_original>
